<compile_context>
chip_gen: v6e
topology: v6e:2x2x1
jax: 0.10.0
libtpu: 0.0.40
codegen_flags: <defaults>
</compile_context>

<pallas_src>
import numpy as np
import jax
import jax.numpy as jnp
from jax.experimental import pallas as pl
from jax.experimental.pallas import tpu as pltpu

LEAK = 0.2


# ----------------------------------------------------------------------------
# Pallas kernel: fused Conv(4,2,1) + bias + LeakyReLU(0.2) + MaxPool(2,2)
# for one batch item and TP pooled output rows per grid step.
# ----------------------------------------------------------------------------
def _conv_block_kernel(se_ref, so_ref, w_ref, b_ref, o_ref, lhs_ref):
    """
    se_ref : (CR+1, Wp+1, K) bf16  even space-to-depth columns (CR = 2*TP conv rows + 1 halo row)
    so_ref : (CR+1, Wp,   K) bf16  odd space-to-depth columns
    w_ref  : (4*K, Cout)     bf16  fused conv weights, rows ordered (a, b, dh, dw, ci)
    b_ref  : (1, Cout)       f32   conv bias
    o_ref  : (TP*Wp, Cout)   f32   pooled output rows, (hp, wp) row-major
    lhs_ref: (4*TP*Wp, 4*K)  bf16  VMEM scratch: big-K LHS slab built in-kernel
    """
    CR = se_ref.shape[0] - 1            # conv rows handled this step (= 2*TP)
    Wp = so_ref.shape[1]                # pooled width
    K = so_ref.shape[2]                 # 4 * Cin
    Cout = o_ref.shape[1]
    TP = CR // 2
    HALF = CR * Wp                      # rows of one conv-column-parity half of the LHS

    # ---- build the (4*TP*Wp, 4*K) LHS slab --------------------------------------
    # rows  : (conv-col parity dc, conv row cr, pooled col wp)
    # lanes : tap group g = 2*a + b (a = row tap pair, b = col tap pair), each K wide
    for a in (0, 1):
        xe_l = se_ref[a:a + CR, 0:Wp, :].reshape(HALF, K)       # s2d col 2*wp
        xe_r = se_ref[a:a + CR, 1:Wp + 1, :].reshape(HALF, K)   # s2d col 2*wp + 2
        xo_a = so_ref[a:a + CR, :, :].reshape(HALF, K)          # s2d col 2*wp + 1
        g0 = (2 * a) * K
        g1 = (2 * a + 1) * K
        # even conv columns (wo = 2*wp):   taps (a,0) <- col 2wp,   (a,1) <- col 2wp+1
        lhs_ref[0:HALF, g0:g0 + K] = xe_l
        lhs_ref[0:HALF, g1:g1 + K] = xo_a
        # odd conv columns (wo = 2*wp+1):  taps (a,0) <- col 2wp+1, (a,1) <- col 2wp+2
        lhs_ref[HALF:2 * HALF, g0:g0 + K] = xo_a
        lhs_ref[HALF:2 * HALF, g1:g1 + K] = xe_r

    # ---- single big MXU matmul: (4*TP*Wp, 4*K) x (4*K, Cout), f32 accumulation ----
    y = jnp.dot(lhs_ref[...], w_ref[...], preferred_element_type=jnp.float32)

    # ---- MaxPool2d(2,2): max over column parity (contiguous halves), then row parity ----
    yc = jnp.maximum(y[0:HALF, :], y[HALF:2 * HALF, :])         # (CR*Wp, Cout)
    yc = yc.reshape(TP, 2 * Wp, Cout)                           # rows (hp, dr*Wp + wp)
    p = jnp.maximum(yc[:, 0:Wp, :], yc[:, Wp:2 * Wp, :])        # (TP, Wp, Cout)
    p = p.reshape(TP * Wp, Cout)

    # bias + LeakyReLU(0.2) after the pool (valid: bias is per-channel constant over
    # each 2x2 window and LeakyReLU is monotone, so they commute with the max).
    p = p + b_ref[...]
    o_ref[...] = jnp.maximum(p, LEAK * p)


# ----------------------------------------------------------------------------
# Wrapper
# ----------------------------------------------------------------------------
def _pick_tp(hp, wp, k, cout, n, budget_bytes=24 * 1024 * 1024):
    """Largest pooled-row tile TP (divisor of hp) whose double-buffered blocks fit a
    v7x-safe VMEM budget; shrunk only if needed to expose >= 2 grid steps (2 TCs)."""
    def fits(tp):
        cr = 2 * tp
        in_b = 2 * ((cr + 1) * (wp + 1) * k * 2 + (cr + 1) * wp * k * 2)  # se + so, double-buffered
        out_b = 2 * tp * wp * cout * 4                                    # out, double-buffered
        w_b = 4 * k * cout * 2 + cout * 4                                 # weights + bias
        lhs_b = 4 * tp * wp * 4 * k * 2                                   # LHS scratch
        return in_b + out_b + w_b + lhs_b <= budget_bytes

    divisors = [d for d in range(hp, 0, -1) if hp % d == 0]
    tp = next((d for d in divisors if fits(d)), 1)
    if n * (hp // tp) < 2:                      # keep both v7x TensorCores busy when possible
        tp = next((d for d in divisors if d <= tp and hp // d >= 2), tp)
    return tp


def _tile_rows(x, t, cr):
    """(N, Q, C, K) with Q = cr*t + 1  ->  (N, t, cr+1, C, K) row tiles + 1-row halo."""
    n, q, c, k = x.shape
    main = x[:, :cr * t].reshape(n, t, cr, c, k)
    halo = x[:, cr::cr][:, :, None]             # rows cr, 2*cr, ..., cr*t
    return jnp.concatenate([main, halo], axis=2)


@jax.jit
def conv_block_forward(x_nchw, w_oihw, b):
    """ConvBlock forward.  x: (N, Cin, H, W) f32 -> (N, Cout, H//4, W//4) f32."""
    N, Cin, H, W = x_nchw.shape
    Cout = w_oihw.shape[0]
    assert H % 4 == 0 and W % 4 == 0, "H and W must be multiples of 4"
    Ho, Wo = H // 2, W // 2            # conv output
    Hp, Wp = Ho // 2, Wo // 2          # pooled output
    Q, P = Ho + 1, Wo + 1              # space-to-depth rows / cols
    K = 4 * Cin

    TP = _pick_tp(Hp, Wp, K, Cout, N)  # pooled rows per grid step (largest that fits VMEM)
    T = Hp // TP
    CR = 2 * TP                        # conv rows per grid step
    M = 4 * TP * Wp                    # M rows of the per-step MXU matmul

    # ---- space-to-depth relayout: pad + one 6-D transpose (~1x activation bytes, bf16) ----
    # s2d[n, q, p, (dh, dw, ci)] = x_pad[n, ci, 2q+dh, 2p+dw]
    x = jnp.pad(x_nchw, ((0, 0), (0, 0), (1, 1), (1, 1)))
    x = x.reshape(N, Cin, Q, 2, P, 2)
    x = x.transpose(0, 2, 4, 3, 5, 1).reshape(N, Q, P, K).astype(jnp.bfloat16)
    xe = x[:, :, 0::2, :]              # (N, Q, Wp+1, K) even s2d columns
    xo = x[:, :, 1::2, :]              # (N, Q, Wp,   K) odd  s2d columns
    se = _tile_rows(xe, T, CR)         # (N, T, CR+1, Wp+1, K)
    so = _tile_rows(xo, T, CR)         # (N, T, CR+1, Wp,   K)

    # fused weights: row index = (2a+b)*K + (2*dh+dw)*Cin + ci  <->  w[co, ci, 2a+dh, 2b+dw]
    wf = jnp.transpose(w_oihw, (2, 3, 1, 0))                 # (kh, kw, ci, co)
    wf = wf.reshape(2, 2, 2, 2, Cin, Cout)                   # (a, dh, b, dw, ci, co)
    wf = wf.transpose(0, 2, 1, 3, 4, 5).reshape(4 * K, Cout).astype(jnp.bfloat16)
    b_row = b.reshape(1, Cout).astype(jnp.float32)

    out = pl.pallas_call(
        _conv_block_kernel,
        out_shape=jax.ShapeDtypeStruct((N, T, TP * Wp, Cout), jnp.float32),
        grid=(N, T),
        in_specs=[
            pl.BlockSpec((None, None, CR + 1, Wp + 1, K), lambda n, t: (n, t, 0, 0, 0)),
            pl.BlockSpec((None, None, CR + 1, Wp, K), lambda n, t: (n, t, 0, 0, 0)),
            pl.BlockSpec((4 * K, Cout), lambda n, t: (0, 0)),
            pl.BlockSpec((1, Cout), lambda n, t: (0, 0)),
        ],
        out_specs=pl.BlockSpec((None, None, TP * Wp, Cout), lambda n, t: (n, t, 0, 0)),
        scratch_shapes=[pltpu.VMEM((M, 4 * K), jnp.bfloat16)],
        compiler_params=pltpu.CompilerParams(
            dimension_semantics=("parallel", "parallel")),
    )(se, so, wf, b_row)

    out = out.reshape(N, Hp, Wp, Cout)                       # (t, hp, wp) -> (hp, wp)
    return jnp.transpose(out, (0, 3, 1, 2))                  # NCHW


# ----------------------------------------------------------------------------
# Pure-JAX reference (PyTorch semantics)
# ----------------------------------------------------------------------------
def ref_conv_block(x_nchw, w_oihw, b):
    y = jax.lax.conv_general_dilated(
        x_nchw, w_oihw, window_strides=(2, 2), padding=((1, 1), (1, 1)),
        dimension_numbers=("NCHW", "OIHW", "NCHW"))
    y = y + b[None, :, None, None]
    y = jnp.where(y >= 0, y, LEAK * y)
    return jax.lax.reduce_window(y, -jnp.inf, jax.lax.max,
                                 (1, 1, 2, 2), (1, 1, 2, 2), "VALID")


if __name__ == "__main__":
    key = jax.random.PRNGKey(0)
    kx, kw, kb = jax.random.split(key, 3)
    N, Cin, H, W = 2, 8, 32, 32
    Cout = 128                                   # lane-dense output (128 lanes)
    x = jax.random.normal(kx, (N, Cin, H, W), jnp.float32)
    w = 0.05 * jax.random.normal(kw, (Cout, Cin, 4, 4), jnp.float32)
    b = 0.05 * jax.random.normal(kb, (Cout,), jnp.float32)

    out = jax.block_until_ready(conv_block_forward(x, w, b))
    ref = jax.block_until_ready(ref_conv_block(x, w, b))

    assert out.shape == (N, Cout, H // 4, W // 4)
    # bf16 MXU inputs with f32 accumulation -> tolerance covers the precision change.
    np.testing.assert_allclose(np.asarray(out), np.asarray(ref), atol=2e-2, rtol=2e-2)
    print("KERNEL_OK")
</pallas_src>

<mosaic_0001>
module attributes {stable_mosaic.version = 11 : i64} {
  func.func @_conv_block_kernel(%arg0: i32, %arg1: i32, %arg2: memref<1x1x17x9x32xbf16, #tpu.memory_space<vmem>>, %arg3: memref<1x1x17x8x32xbf16, #tpu.memory_space<vmem>>, %arg4: memref<128x128xbf16, #tpu.memory_space<vmem>>, %arg5: memref<1x128xf32, #tpu.memory_space<vmem>>, %arg6: memref<1x1x64x128xf32, #tpu.memory_space<vmem>>, %arg7: memref<256x128xbf16, #tpu.memory_space<vmem>>) attributes {dimension_semantics = [#tpu.dimension_semantics<parallel>, #tpu.dimension_semantics<parallel>], iteration_bounds = array<i64: 2, 1>, scalar_prefetch = 0 : i64, scratch_operands = 1 : i64, tpu.core_type = #tpu.core_type<tc>, window_params = [{transform_indices = @transform_0, window_bounds = array<i64: 1, 1, 17, 9, 32>}, {transform_indices = @transform_1, window_bounds = array<i64: 1, 1, 17, 8, 32>}, {pipeline_mode = #tpu.pipeline_mode<synchronous>, transform_indices = @transform_2, window_bounds = array<i64: 128, 128>}, {pipeline_mode = #tpu.pipeline_mode<synchronous>, transform_indices = @transform_3, window_bounds = array<i64: 1, 128>}, {transform_indices = @transform_4, window_bounds = array<i64: 1, 1, 64, 128>}]} {
    %c0 = arith.constant 0 : index
    %c0_0 = arith.constant 0 : index
    %c0_1 = arith.constant 0 : index
    %c0_2 = arith.constant 0 : index
    %c0_3 = arith.constant 0 : index
    %0 = vector.load %arg2[%c0, %c0_0, %c0_1, %c0_2, %c0_3] : memref<1x1x17x9x32xbf16, #tpu.memory_space<vmem>>, vector<1x1x16x8x32xbf16>
    %1 = vector.shape_cast %0 : vector<1x1x16x8x32xbf16> to vector<16x8x32xbf16>
    %2 = vector.shape_cast %1 : vector<16x8x32xbf16> to vector<128x32xbf16>
    %c0_4 = arith.constant 0 : index
    %c0_5 = arith.constant 0 : index
    %c0_6 = arith.constant 0 : index
    %c1 = arith.constant 1 : index
    %c0_7 = arith.constant 0 : index
    %3 = vector.load %arg2[%c0_4, %c0_5, %c0_6, %c1, %c0_7] : memref<1x1x17x9x32xbf16, #tpu.memory_space<vmem>>, vector<1x1x16x8x32xbf16>
    %4 = vector.shape_cast %3 : vector<1x1x16x8x32xbf16> to vector<16x8x32xbf16>
    %5 = vector.shape_cast %4 : vector<16x8x32xbf16> to vector<128x32xbf16>
    %c0_8 = arith.constant 0 : index
    %c0_9 = arith.constant 0 : index
    %c0_10 = arith.constant 0 : index
    %c0_11 = arith.constant 0 : index
    %c0_12 = arith.constant 0 : index
    %6 = vector.load %arg3[%c0_8, %c0_9, %c0_10, %c0_11, %c0_12] : memref<1x1x17x8x32xbf16, #tpu.memory_space<vmem>>, vector<1x1x16x8x32xbf16>
    %7 = vector.shape_cast %6 : vector<1x1x16x8x32xbf16> to vector<16x8x32xbf16>
    %8 = vector.shape_cast %7 : vector<16x8x32xbf16> to vector<128x32xbf16>
    %c0_13 = arith.constant 0 : index
    %c0_14 = arith.constant 0 : index
    %9 = vector.load %arg7[%c0_13, %c0_14] : memref<256x128xbf16, #tpu.memory_space<vmem>>, vector<128x32xbf16>
    tpu.vector_store %arg7[%c0_13, %c0_14], %2 {strides = array<i32>} : memref<256x128xbf16, #tpu.memory_space<vmem>>, vector<128x32xbf16>,
    %c0_15 = arith.constant 0 : index
    %c32 = arith.constant 32 : index
    %10 = vector.load %arg7[%c0_15, %c32] : memref<256x128xbf16, #tpu.memory_space<vmem>>, vector<128x32xbf16>
    tpu.vector_store %arg7[%c0_15, %c32], %8 {strides = array<i32>} : memref<256x128xbf16, #tpu.memory_space<vmem>>, vector<128x32xbf16>,
    %c128 = arith.constant 128 : index
    %c0_16 = arith.constant 0 : index
    %11 = vector.load %arg7[%c128, %c0_16] : memref<256x128xbf16, #tpu.memory_space<vmem>>, vector<128x32xbf16>
    tpu.vector_store %arg7[%c128, %c0_16], %8 {strides = array<i32>} : memref<256x128xbf16, #tpu.memory_space<vmem>>, vector<128x32xbf16>,
    %c128_17 = arith.constant 128 : index
    %c32_18 = arith.constant 32 : index
    %12 = vector.load %arg7[%c128_17, %c32_18] : memref<256x128xbf16, #tpu.memory_space<vmem>>, vector<128x32xbf16>
    tpu.vector_store %arg7[%c128_17, %c32_18], %5 {strides = array<i32>} : memref<256x128xbf16, #tpu.memory_space<vmem>>, vector<128x32xbf16>,
    %c0_19 = arith.constant 0 : index
    %c0_20 = arith.constant 0 : index
    %c1_21 = arith.constant 1 : index
    %c0_22 = arith.constant 0 : index
    %c0_23 = arith.constant 0 : index
    %13 = vector.load %arg2[%c0_19, %c0_20, %c1_21, %c0_22, %c0_23] : memref<1x1x17x9x32xbf16, #tpu.memory_space<vmem>>, vector<1x1x16x8x32xbf16>
    %14 = vector.shape_cast %13 : vector<1x1x16x8x32xbf16> to vector<16x8x32xbf16>
    %15 = vector.shape_cast %14 : vector<16x8x32xbf16> to vector<128x32xbf16>
    %c0_24 = arith.constant 0 : index
    %c0_25 = arith.constant 0 : index
    %c1_26 = arith.constant 1 : index
    %c1_27 = arith.constant 1 : index
    %c0_28 = arith.constant 0 : index
    %16 = vector.load %arg2[%c0_24, %c0_25, %c1_26, %c1_27, %c0_28] : memref<1x1x17x9x32xbf16, #tpu.memory_space<vmem>>, vector<1x1x16x8x32xbf16>
    %17 = vector.shape_cast %16 : vector<1x1x16x8x32xbf16> to vector<16x8x32xbf16>
    %18 = vector.shape_cast %17 : vector<16x8x32xbf16> to vector<128x32xbf16>
    %c0_29 = arith.constant 0 : index
    %c0_30 = arith.constant 0 : index
    %c1_31 = arith.constant 1 : index
    %c0_32 = arith.constant 0 : index
    %c0_33 = arith.constant 0 : index
    %19 = vector.load %arg3[%c0_29, %c0_30, %c1_31, %c0_32, %c0_33] : memref<1x1x17x8x32xbf16, #tpu.memory_space<vmem>>, vector<1x1x16x8x32xbf16>
    %20 = vector.shape_cast %19 : vector<1x1x16x8x32xbf16> to vector<16x8x32xbf16>
    %21 = vector.shape_cast %20 : vector<16x8x32xbf16> to vector<128x32xbf16>
    %c0_34 = arith.constant 0 : index
    %c64 = arith.constant 64 : index
    %22 = vector.load %arg7[%c0_34, %c64] : memref<256x128xbf16, #tpu.memory_space<vmem>>, vector<128x32xbf16>
    tpu.vector_store %arg7[%c0_34, %c64], %15 {strides = array<i32>} : memref<256x128xbf16, #tpu.memory_space<vmem>>, vector<128x32xbf16>,
    %c0_35 = arith.constant 0 : index
    %c96 = arith.constant 96 : index
    %23 = vector.load %arg7[%c0_35, %c96] : memref<256x128xbf16, #tpu.memory_space<vmem>>, vector<128x32xbf16>
    tpu.vector_store %arg7[%c0_35, %c96], %21 {strides = array<i32>} : memref<256x128xbf16, #tpu.memory_space<vmem>>, vector<128x32xbf16>,
    %c128_36 = arith.constant 128 : index
    %c64_37 = arith.constant 64 : index
    %24 = vector.load %arg7[%c128_36, %c64_37] : memref<256x128xbf16, #tpu.memory_space<vmem>>, vector<128x32xbf16>
    tpu.vector_store %arg7[%c128_36, %c64_37], %21 {strides = array<i32>} : memref<256x128xbf16, #tpu.memory_space<vmem>>, vector<128x32xbf16>,
    %c128_38 = arith.constant 128 : index
    %c96_39 = arith.constant 96 : index
    %25 = vector.load %arg7[%c128_38, %c96_39] : memref<256x128xbf16, #tpu.memory_space<vmem>>, vector<128x32xbf16>
    tpu.vector_store %arg7[%c128_38, %c96_39], %18 {strides = array<i32>} : memref<256x128xbf16, #tpu.memory_space<vmem>>, vector<128x32xbf16>,
    %c0_40 = arith.constant 0 : index
    %c0_41 = arith.constant 0 : index
    %26 = vector.load %arg7[%c0_40, %c0_41] : memref<256x128xbf16, #tpu.memory_space<vmem>>, vector<256x128xbf16>
    %c0_42 = arith.constant 0 : index
    %c0_43 = arith.constant 0 : index
    %27 = vector.load %arg4[%c0_42, %c0_43] : memref<128x128xbf16, #tpu.memory_space<vmem>>, vector<128x128xbf16>
    %cst = arith.constant dense<0.000000e+00> : vector<256x128xf32>
    %28 = tpu.matmul %26, %27, %cst {dimension_numbers = #tpu.dot_dimension_numbers<[1], [0], [0], [1], [0, 0, 1, 1], [], []>} : vector<256x128xbf16>, vector<128x128xbf16>, vector<256x128xf32> -> vector<256x128xf32>
    %29 = vector.extract_strided_slice %28 {offsets = [0, 0], sizes = [128, 128], strides = [1, 1]} : vector<256x128xf32> to vector<128x128xf32>
    %30 = vector.extract_strided_slice %28 {offsets = [128, 0], sizes = [128, 128], strides = [1, 1]} : vector<256x128xf32> to vector<128x128xf32>
    %31 = arith.maximumf %29, %30 : vector<128x128xf32>
    %32 = vector.shape_cast %31 : vector<128x128xf32> to vector<8x16x128xf32>
    %33 = vector.extract_strided_slice %32 {offsets = [0, 0, 0], sizes = [8, 8, 128], strides = [1, 1, 1]} : vector<8x16x128xf32> to vector<8x8x128xf32>
    %34 = vector.extract_strided_slice %32 {offsets = [0, 8, 0], sizes = [8, 8, 128], strides = [1, 1, 1]} : vector<8x16x128xf32> to vector<8x8x128xf32>
    %35 = arith.maximumf %33, %34 : vector<8x8x128xf32>
    %36 = vector.shape_cast %35 : vector<8x8x128xf32> to vector<64x128xf32>
    %c0_44 = arith.constant 0 : index
    %c0_45 = arith.constant 0 : index
    %37 = vector.load %arg5[%c0_44, %c0_45] : memref<1x128xf32, #tpu.memory_space<vmem>>, vector<1x128xf32>
    %38 = vector.broadcast %37 : vector<1x128xf32> to vector<64x128xf32>
    %39 = arith.addf %36, %38 : vector<64x128xf32>
    %cst_46 = arith.constant 2.000000e-01 : f32
    %40 = vector.broadcast %cst_46 : f32 to vector<64x128xf32>
    %41 = arith.mulf %40, %39 : vector<64x128xf32>
    %42 = arith.maximumf %39, %41 : vector<64x128xf32>
    %c0_47 = arith.constant 0 : index
    %c0_48 = arith.constant 0 : index
    %c0_49 = arith.constant 0 : index
    %c0_50 = arith.constant 0 : index
    %43 = vector.load %arg6[%c0_47, %c0_48, %c0_49, %c0_50] : memref<1x1x64x128xf32, #tpu.memory_space<vmem>>, vector<1x1x64x128xf32>
    %44 = vector.shape_cast %43 : vector<1x1x64x128xf32> to vector<64x128xf32>
    %45 = vector.shape_cast %42 : vector<64x128xf32> to vector<1x1x64x128xf32>
    tpu.vector_store %arg6[%c0_47, %c0_48, %c0_49, %c0_50], %45 {strides = array<i32>} : memref<1x1x64x128xf32, #tpu.memory_space<vmem>>, vector<1x1x64x128xf32>,
    return
  }
  func.func @transform_0(%arg0: i32, %arg1: i32) -> (i32, i32, i32, i32, i32) {
    %c0_i32 = arith.constant 0 : i32
    %c0_i32_0 = arith.constant 0 : i32
    %c0_i32_1 = arith.constant 0 : i32
    %c0_i32_2 = arith.constant 0 : i32
    return %arg0, %arg1, %c0_i32, %c0_i32_0, %c0_i32_1 : i32, i32, i32, i32, i32
  }
  func.func @transform_1(%arg0: i32, %arg1: i32) -> (i32, i32, i32, i32, i32) {
    %c0_i32 = arith.constant 0 : i32
    %c0_i32_0 = arith.constant 0 : i32
    %c0_i32_1 = arith.constant 0 : i32
    %c0_i32_2 = arith.constant 0 : i32
    return %arg0, %arg1, %c0_i32, %c0_i32_0, %c0_i32_1 : i32, i32, i32, i32, i32
  }
  func.func @transform_2(%arg0: i32, %arg1: i32) -> (i32, i32) {
    %c0_i32 = arith.constant 0 : i32
    %c0_i32_0 = arith.constant 0 : i32
    %c0_i32_1 = arith.constant 0 : i32
    return %c0_i32, %c0_i32_0 : i32, i32
  }
  func.func @transform_3(%arg0: i32, %arg1: i32) -> (i32, i32) {
    %c0_i32 = arith.constant 0 : i32
    %c0_i32_0 = arith.constant 0 : i32
    %c0_i32_1 = arith.constant 0 : i32
    return %c0_i32, %c0_i32_0 : i32, i32
  }
  func.func @transform_4(%arg0: i32, %arg1: i32) -> (i32, i32, i32, i32) {
    %c0_i32 = arith.constant 0 : i32
    %c0_i32_0 = arith.constant 0 : i32
    %c0_i32_1 = arith.constant 0 : i32
    return %arg0, %arg1, %c0_i32, %c0_i32_0 : i32, i32, i32, i32
  }
}

</mosaic_0001>

<llo_original>
// kernel: conv_block_forward.1
$region0: #{conv_block_forward.1}
  #allocation0 [shape = 'u32[]', space=smem, size = 0x4, offset = 0x4, fixed_abs, tag = 'smem constant byte address 0x4 - core index']
  #allocation1 [shape = 'u32[144,128]{1,0:T(1,128)}', space=vmem, size = 0x12000, scoped, tag = 'internal scratch']
  #allocation2 [shape = 'bf16[256,128]{1,0:T(8,128)(2,1)}', space=vmem, size = 0x10000, scoped, tag = 'scratch operand']
  %s0 = inlined_call_operand.vmem [shape: bf16[2,1,17,9,32], index: 0, kind: input, shape index: {}]
  %s1 = inlined_call_operand.vmem [shape: bf16[2,1,17,8,32], index: 1, kind: input, shape index: {}]
  %s2 = inlined_call_operand.vmem [shape: bf16[128,128], index: 2, kind: input, shape index: {}]
  %s3 = inlined_call_operand.vmem [shape: f32[1,128], index: 3, kind: input, shape index: {}]
  %s4 = inlined_call_operand.hbm [shape: f32[2,1,64,128], index: 4, kind: output, shape index: {}]
  %s5 = sld [smem:[#allocation0]]
  $region49: #{conv_block_forward.1} parent=0
    _
  %s7 = ssub.s32 1, %s5
  %s8 = scalar_select 0, %s7, %s5
  $region1: #{conv_block_forward.1} parent=0
    #allocation3 [shape = 'u8[65536]{0}', space=vmem, size = 0x10000, scoped, tag = 'output window, operand 0']
    #allocation4 [shape = 's32[2]{0}', space=sflag, size = 0x8, scoped, tag = 'scoped memory for conv_block_forward.1']
    %9 = vsyncpa [#allocation4], 0
    %s10 = scalar_lea.sflag [#allocation4], 1
    %11 = vsyncpa %s10, 0
    loop: start=0, step=1, limit=4
    $region2: #{conv_block_forward.1} parent=1 // loop_pre_header
      _
    $region3: #{conv_block_forward.1} parent=1 // loop_header
      %s13 = sphi 0, %s17
      %p14 = scmp.ge.s32.totalorder %s13, 4
      %s20 = sphi 0, %s32
      %s21 = sphi 0, %s28
      %s22 = sphi 0, %s20
      %s23 = sphi 0, %s21
      %s24 = sphi 0, %s22
      %s25 = sphi 0, %s23
      %s37 = sphi 0, %s39
      %s40 = sphi 0, %s37
      %s41 = sphi 0, %s40
      %s57 = sphi 0, %s41
      %s65 = sphi 0, %s67
      %s68 = sphi 0, %s65
      %s69 = sphi 0, %s68
      %s85 = sphi 0, %s69
      %s89 = sphi 0, %s89
      %s91 = sphi 0, %s89
      %s92 = sphi 0, %s91
      %s106 = sphi 0, %s92
      %s110 = sphi 0, %s110
      %s112 = sphi 0, %s110
      %s113 = sphi 0, %s112
      %s127 = sphi 0, %s113
      %s135 = sphi 0, %s137
      %s138 = sphi 0, %s135
      %s139 = sphi 0, %s138
      %s155 = sphi 0, %s139
    $region4: #{conv_block_forward.1} parent=1 // loop_header_branch
      %16 = sbr.rel (%p14) target = $region8
    $region5: #{conv_block_forward.1} parent=1 // loop_body
      %s18 = ssub.s32 %s13, 1
      %s19 = ssub.s32 %s13, 2
      %s26 = sadd.s32 1, %s21
      %p27 = scmp.ge.s32.totalorder %s26, 1
      %s28 = scalar_select %p27, 0, %s26
      %s29 = sadd.s32 1, %s20
      %s30 = scalar_select %p27, %s29, %s20
      %p31 = scmp.ge.s32.totalorder %s30, 2
      %s32 = scalar_select %p31, 0, %s30
      %s33 = ssub.s32 %s20, %s32
      %s34 = ssub.s32 %s21, %s28
      %s35 = sor.u32 %s33, %s34
      %p36 = scmp.eq.s32.totalorder %s35, 0
      %s38 = sadd.s32 %s37, 1
      %s39 = scalar_select %p36, %s37, %s38
      %p42 = pneg %p36
      %p43 = scmp.eq.s32.totalorder %s13, 1
      %p44 = por %p42, %p43
      %p45 = scmp.ne.s32.totalorder %s37, %s40
      %p46 = scmp.eq.s32.totalorder %s13, 0
      %p47 = por %p45, %p46
      %p48 = scmp.ne.s32.totalorder %s37, %s40
      %p49 = scmp.eq.s32.totalorder %s18, 1
      %p50 = por %p48, %p49
      %p51 = scmp.ne.s32.totalorder %s40, %s41
      %p52 = scmp.eq.s32.totalorder %s18, 0
      %p53 = por %p51, %p52
      %p54 = scmp.ne.s32.totalorder %s40, %s41
      %p55 = scmp.eq.s32.totalorder %s19, 1
      %p56 = por %p54, %p55
      %p58 = scmp.ne.s32.totalorder %s41, %s57
      %p59 = scmp.eq.s32.totalorder %s19, 0
      %p60 = por %p58, %p59
      %s61 = ssub.s32 %s20, %s32
      %s62 = ssub.s32 %s21, %s28
      %s63 = sor.u32 %s61, %s62
      %p64 = scmp.eq.s32.totalorder %s63, 0
      %s66 = sadd.s32 %s65, 1
      %s67 = scalar_select %p64, %s65, %s66
      %p70 = pneg %p64
      %p71 = scmp.eq.s32.totalorder %s13, 1
      %p72 = por %p70, %p71
      %p73 = scmp.ne.s32.totalorder %s65, %s68
      %p74 = scmp.eq.s32.totalorder %s13, 0
      %p75 = por %p73, %p74
      %p76 = scmp.ne.s32.totalorder %s65, %s68
      %p77 = scmp.eq.s32.totalorder %s18, 1
      %p78 = por %p76, %p77
      %p79 = scmp.ne.s32.totalorder %s68, %s69
      %p80 = scmp.eq.s32.totalorder %s18, 0
      %p81 = por %p79, %p80
      %p82 = scmp.ne.s32.totalorder %s68, %s69
      %p83 = scmp.eq.s32.totalorder %s19, 1
      %p84 = por %p82, %p83
      %p86 = scmp.ne.s32.totalorder %s69, %s85
      %p87 = scmp.eq.s32.totalorder %s19, 0
      %p88 = por %p86, %p87
      %s90 = sadd.s32 %s89, 1
      %p93 = scmp.eq.s32.totalorder %s13, 1
      %p94 = scmp.ne.s32.totalorder %s89, %s91
      %p95 = scmp.eq.s32.totalorder %s13, 0
      %p96 = por %p94, %p95
      %p97 = scmp.ne.s32.totalorder %s89, %s91
      %p98 = scmp.eq.s32.totalorder %s18, 1
      %p99 = por %p97, %p98
      %p100 = scmp.ne.s32.totalorder %s91, %s92
      %p101 = scmp.eq.s32.totalorder %s18, 0
      %p102 = por %p100, %p101
      %p103 = scmp.ne.s32.totalorder %s91, %s92
      %p104 = scmp.eq.s32.totalorder %s19, 1
      %p105 = por %p103, %p104
      %p107 = scmp.ne.s32.totalorder %s92, %s106
      %p108 = scmp.eq.s32.totalorder %s19, 0
      %p109 = por %p107, %p108
      %s111 = sadd.s32 %s110, 1
      %p114 = scmp.eq.s32.totalorder %s13, 1
      %p115 = scmp.ne.s32.totalorder %s110, %s112
      %p116 = scmp.eq.s32.totalorder %s13, 0
      %p117 = por %p115, %p116
      %p118 = scmp.ne.s32.totalorder %s110, %s112
      %p119 = scmp.eq.s32.totalorder %s18, 1
      %p120 = por %p118, %p119
      %p121 = scmp.ne.s32.totalorder %s112, %s113
      %p122 = scmp.eq.s32.totalorder %s18, 0
      %p123 = por %p121, %p122
      %p124 = scmp.ne.s32.totalorder %s112, %s113
      %p125 = scmp.eq.s32.totalorder %s19, 1
      %p126 = por %p124, %p125
      %p128 = scmp.ne.s32.totalorder %s113, %s127
      %p129 = scmp.eq.s32.totalorder %s19, 0
      %p130 = por %p128, %p129
      %s131 = ssub.s32 %s20, %s32
      %s132 = ssub.s32 %s21, %s28
      %s133 = sor.u32 %s131, %s132
      %p134 = scmp.eq.s32.totalorder %s133, 0
      %s136 = sadd.s32 %s135, 1
      %s137 = scalar_select %p134, %s135, %s136
      %p140 = pneg %p134
      %p141 = scmp.eq.s32.totalorder %s13, 1
      %p142 = por %p140, %p141
      %p143 = scmp.ne.s32.totalorder %s135, %s138
      %p144 = scmp.eq.s32.totalorder %s13, 0
      %p145 = por %p143, %p144
      %p146 = scmp.ne.s32.totalorder %s135, %s138
      %p147 = scmp.eq.s32.totalorder %s18, 1
      %p148 = por %p146, %p147
      %p149 = scmp.ne.s32.totalorder %s138, %s139
      %p150 = scmp.eq.s32.totalorder %s18, 0
      %p151 = por %p149, %p150
      %p152 = scmp.ne.s32.totalorder %s138, %s139
      %p153 = scmp.eq.s32.totalorder %s19, 1
      %p154 = por %p152, %p153
      %p156 = scmp.ne.s32.totalorder %s139, %s155
      %p157 = scmp.eq.s32.totalorder %s19, 0
      %p158 = por %p156, %p157
      %p159 = scmp.le.s32.totalorder 1, %s13
      %p160 = scmp.lt.s32.totalorder %s13, 3
      %p161 = pnand %p159, %p160
      %p162 = pneg %p161
      // Predicated region
      $region9: #{conv_block_forward.1} parent=5 // pred_check
        _
      $region10: #{conv_block_forward.1} parent=5 // pred_check_branch
        %164 = sbr.rel (%p161) target = $region12
      $region11: #{conv_block_forward.1} parent=5 // pred_region
        %s165 = ssub.s32 %s13, 1
        // Predicated region
        $region13: #{conv_block_forward.1} parent=11 // pred_check
          %p166 = pneg %p102
        $region14: #{conv_block_forward.1} parent=11 // pred_check_branch
          %168 = sbr.rel (%p166) target = $region16
        $region15: #{conv_block_forward.1} parent=11 // pred_region
          _
        $region16: #{conv_block_forward.1} parent=11 // pred_fallthru
          _
        // Predicated region
        $region17: #{conv_block_forward.1} parent=11 // pred_check
          %p169 = pneg %p123
        $region18: #{conv_block_forward.1} parent=11 // pred_check_branch
          %171 = sbr.rel (%p169) target = $region20
        $region19: #{conv_block_forward.1} parent=11 // pred_region
          _
        $region20: #{conv_block_forward.1} parent=11 // pred_fallthru
          _
      $region12: #{conv_block_forward.1} parent=5 // pred_fallthru
        _
      %p172 = scmp.lt.s32.totalorder %s13, 2
      // Predicated region
      $region21: #{conv_block_forward.1} parent=5 // pred_check
        %p173 = pneg %p172
      $region22: #{conv_block_forward.1} parent=5 // pred_check_branch
        %175 = sbr.rel (%p173) target = $region24
      $region23: #{conv_block_forward.1} parent=5 // pred_region
        // Predicated region
        $region25: #{conv_block_forward.1} parent=23 // pred_check
          %p176 = pneg %p47
        $region26: #{conv_block_forward.1} parent=23 // pred_check_branch
          %178 = sbr.rel (%p176) target = $region28
        $region27: #{conv_block_forward.1} parent=23 // pred_region
          %p179 = scmp.lt.s32.totalorder %s20, 1
          %s180 = scalar_select %p179, %s20, 1
          %p181 = scmp.lt.s32.totalorder %s21, 0
          %s182 = scalar_select %p181, %s21, 0
          %s183 = smul.addr %s182, 34
          %s184 = smul.addr %s180, 34
          %s185 = sadd.s32 %s183, %s184
          %s186 = smul.addr %s185, 4
          %s187 = scalar_lea.vmem %s0, %s186
        $region28: #{conv_block_forward.1} parent=23 // pred_fallthru
          _
        // Predicated region
        $region29: #{conv_block_forward.1} parent=23 // pred_check
          %p188 = pneg %p75
        $region30: #{conv_block_forward.1} parent=23 // pred_check_branch
          %190 = sbr.rel (%p188) target = $region32
        $region31: #{conv_block_forward.1} parent=23 // pred_region
          %p191 = scmp.lt.s32.totalorder %s20, 1
          %s192 = scalar_select %p191, %s20, 1
          %p193 = scmp.lt.s32.totalorder %s21, 0
          %s194 = scalar_select %p193, %s21, 0
          %s195 = smul.addr %s194, 17
          %s196 = smul.addr %s192, 17
          %s197 = sadd.s32 %s195, %s196
          %s198 = smul.addr %s197, 4
          %s199 = scalar_lea.vmem %s1, %s198
        $region32: #{conv_block_forward.1} parent=23 // pred_fallthru
          _
      $region24: #{conv_block_forward.1} parent=5 // pred_fallthru
        _
      %p200 = scmp.le.s32.totalorder 1, %s13
      %p201 = scmp.lt.s32.totalorder %s13, 3
      %p202 = pnand %p200, %p201
      %p203 = pneg %p202
      // Predicated region
      $region33: #{conv_block_forward.1} parent=5 // pred_check
        _
      $region34: #{conv_block_forward.1} parent=5 // pred_check_branch
        %205 = sbr.rel (%p202) target = $region36
      $region35: #{conv_block_forward.1} parent=5 // pred_region
        %s206 = ssub.s32 %s13, 1
        %p207 = scmp.lt.s32.totalorder %s22, 1
        %s208 = scalar_select %p207, %s22, 1
        %p209 = scmp.lt.s32.totalorder %s23, 0
        %s210 = scalar_select %p209, %s23, 0
        %s211 = smul.addr %s210, 34
        %s212 = smul.addr %s208, 34
        %s213 = sadd.s32 %s211, %s212
        %s214 = smul.addr %s213, 4
        %s215 = scalar_lea.vmem %s0, %s214
        %p216 = pneg %p53
        %p217 = pneg %p50
        %p218 = scmp.lt.s32.totalorder %s22, 1
        %s219 = scalar_select %p218, %s22, 1
        %p220 = scmp.lt.s32.totalorder %s23, 0
        %s221 = scalar_select %p220, %s23, 0
        %s222 = smul.addr %s221, 17
        %s223 = smul.addr %s219, 17
        %s224 = sadd.s32 %s222, %s223
        %s225 = smul.addr %s224, 4
        %s226 = scalar_lea.vmem %s1, %s225
        %p227 = pneg %p81
        %p228 = pneg %p78
        %p229 = pneg %p102
        %p230 = pneg %p99
        %p231 = pneg %p123
        %p232 = pneg %p120
        %p233 = pneg %p151
        %p234 = pneg %p148
        %s235 = sand.u32 %s138, 1
        %s236 = scalar_lea.sflag [#allocation4], %s235
        %s237 = sand.u32 %s138, 1
        %s238 = smul.addr %s237, 64
        %s239 = scalar_lea.vmem [#allocation3], %s238
        %p240 = scmp.lt.s32.totalorder %s22, 1
        %s241 = scalar_select %p240, %s22, 1
        %p242 = scmp.lt.s32.totalorder %s23, 0
        %s243 = scalar_select %p242, %s23, 0
        %s244 = smul.addr %s243, 34
        %s245 = smul.addr %s241, 34
        %s246 = sadd.s32 %s244, %s245
        %s247 = smul.addr %s246, 4
        %s248 = scalar_lea.vmem %s0, %s247
        %p249 = scmp.lt.s32.totalorder %s22, 1
        %s250 = scalar_select %p249, %s22, 1
        %p251 = scmp.lt.s32.totalorder %s23, 0
        %s252 = scalar_select %p251, %s23, 0
        %s253 = smul.addr %s252, 17
        %s254 = smul.addr %s250, 17
        %s255 = sadd.s32 %s253, %s254
        %s256 = smul.addr %s255, 4
        %s257 = scalar_lea.vmem %s1, %s256
        %v259 = vld [vmem:[%s248] sm:$0xf]
        %v260 = vld [vmem:[%s248 + $0x8] sm:$0xf]
        %v261 = vld [vmem:[%s248 + $0x10] sm:$0xf]
        %v262 = vld [vmem:[%s248 + $0x18] sm:$0xf]
        %v263 = vld [vmem:[%s248 + $0x20] sm:$0xf]
        %v264 = vld [vmem:[%s248 + $0x28] sm:$0xf]
        %v265 = vld [vmem:[%s248 + $0x30] sm:$0xf]
        %v266 = vld [vmem:[%s248 + $0x38] sm:$0xf]
        %v267 = vld [vmem:[%s248 + $0x40] sm:$0xf]
        %v268 = vld [vmem:[%s248 + $0x48] sm:$0xf]
        %v269 = vld [vmem:[%s248 + $0x50] sm:$0xf]
        %v270 = vld [vmem:[%s248 + $0x58] sm:$0xf]
        %v271 = vld [vmem:[%s248 + $0x60] sm:$0xf]
        %v272 = vld [vmem:[%s248 + $0x68] sm:$0xf]
        %v273 = vld [vmem:[%s248 + $0x70] sm:$0xf]
        %v274 = vld [vmem:[%s248 + $0x78] sm:$0xf]
        %v275 = vld [vmem:[%s248 + $0x4] sm:$0x1]
        %v276 = vld [vmem:[%s248 + $0xc] sm:$0x1]
        %v277 = vld [vmem:[%s248 + $0x14] sm:$0x1]
        %v278 = vld [vmem:[%s248 + $0x1c] sm:$0x1]
        %v279 = vld [vmem:[%s248 + $0x24] sm:$0x1]
        %v280 = vld [vmem:[%s248 + $0x2c] sm:$0x1]
        %v281 = vld [vmem:[%s248 + $0x34] sm:$0x1]
        %v282 = vld [vmem:[%s248 + $0x3c] sm:$0x1]
        %v283 = vld [vmem:[%s248 + $0x44] sm:$0x1]
        %v284 = vld [vmem:[%s248 + $0x4c] sm:$0x1]
        %v285 = vld [vmem:[%s248 + $0x54] sm:$0x1]
        %v286 = vld [vmem:[%s248 + $0x5c] sm:$0x1]
        %v287 = vld [vmem:[%s248 + $0x64] sm:$0x1]
        %v288 = vld [vmem:[%s248 + $0x6c] sm:$0x1]
        %v289 = vld [vmem:[%s248 + $0x74] sm:$0x1]
        %v290 = vld [vmem:[%s248 + $0x7c] sm:$0x1]
        %vm291 = vsmask.f32 3328
        %vm292 = vsmask.f32 7440
        %vm293 = vmor %vm291, %vm292
        %v295 = vshrl.u32 %v259, 16
        %v297 = vrot.slane %v295, 4
        %v298 = vshll.u32 %v259, 16
        %v300 = vrot.slane %v298, 5
        %v301 = vor.u32 %v297, %v300
        %v302 = vrot.slane %v301, 4
        %v304 = vshll.u32 %v275, 16
        %v306 = vrot.slane %v304, 5
        %v307 = vsel %vm293, %v302, %v306
        %v309 = vshrl.u32 %v260, 16
        %v311 = vrot.slane %v309, 4
        %v312 = vshll.u32 %v260, 16
        %v314 = vrot.slane %v312, 5
        %v315 = vor.u32 %v311, %v314
        %v316 = vrot.slane %v315, 4
        %v318 = vshll.u32 %v276, 16
        %v320 = vrot.slane %v318, 5
        %v321 = vsel %vm293, %v316, %v320
        %v323 = vshrl.u32 %v261, 16
        %v325 = vrot.slane %v323, 4
        %v326 = vshll.u32 %v261, 16
        %v328 = vrot.slane %v326, 5
        %v329 = vor.u32 %v325, %v328
        %v330 = vrot.slane %v329, 4
        %v332 = vshll.u32 %v277, 16
        %v334 = vrot.slane %v332, 5
        %v335 = vsel %vm293, %v330, %v334
        %v337 = vshrl.u32 %v262, 16
        %v339 = vrot.slane %v337, 4
        %v340 = vshll.u32 %v262, 16
        %v342 = vrot.slane %v340, 5
        %v343 = vor.u32 %v339, %v342
        %v344 = vrot.slane %v343, 4
        %v346 = vshll.u32 %v278, 16
        %v348 = vrot.slane %v346, 5
        %v349 = vsel %vm293, %v344, %v348
        %v351 = vshrl.u32 %v263, 16
        %v353 = vrot.slane %v351, 4
        %v354 = vshll.u32 %v263, 16
        %v356 = vrot.slane %v354, 5
        %v357 = vor.u32 %v353, %v356
        %v358 = vrot.slane %v357, 4
        %v360 = vshll.u32 %v279, 16
        %v362 = vrot.slane %v360, 5
        %v363 = vsel %vm293, %v358, %v362
        %v365 = vshrl.u32 %v264, 16
        %v367 = vrot.slane %v365, 4
        %v368 = vshll.u32 %v264, 16
        %v370 = vrot.slane %v368, 5
        %v371 = vor.u32 %v367, %v370
        %v372 = vrot.slane %v371, 4
        %v374 = vshll.u32 %v280, 16
        %v376 = vrot.slane %v374, 5
        %v377 = vsel %vm293, %v372, %v376
        %v379 = vshrl.u32 %v265, 16
        %v381 = vrot.slane %v379, 4
        %v382 = vshll.u32 %v265, 16
        %v384 = vrot.slane %v382, 5
        %v385 = vor.u32 %v381, %v384
        %v386 = vrot.slane %v385, 4
        %v388 = vshll.u32 %v281, 16
        %v390 = vrot.slane %v388, 5
        %v391 = vsel %vm293, %v386, %v390
        %v393 = vshrl.u32 %v266, 16
        %v395 = vrot.slane %v393, 4
        %v396 = vshll.u32 %v266, 16
        %v398 = vrot.slane %v396, 5
        %v399 = vor.u32 %v395, %v398
        %v400 = vrot.slane %v399, 4
        %v402 = vshll.u32 %v282, 16
        %v404 = vrot.slane %v402, 5
        %v405 = vsel %vm293, %v400, %v404
        %v407 = vshrl.u32 %v267, 16
        %v409 = vrot.slane %v407, 4
        %v410 = vshll.u32 %v267, 16
        %v412 = vrot.slane %v410, 5
        %v413 = vor.u32 %v409, %v412
        %v414 = vrot.slane %v413, 4
        %v416 = vshll.u32 %v283, 16
        %v418 = vrot.slane %v416, 5
        %v419 = vsel %vm293, %v414, %v418
        %v421 = vshrl.u32 %v268, 16
        %v423 = vrot.slane %v421, 4
        %v424 = vshll.u32 %v268, 16
        %v426 = vrot.slane %v424, 5
        %v427 = vor.u32 %v423, %v426
        %v428 = vrot.slane %v427, 4
        %v430 = vshll.u32 %v284, 16
        %v432 = vrot.slane %v430, 5
        %v433 = vsel %vm293, %v428, %v432
        %v435 = vshrl.u32 %v269, 16
        %v437 = vrot.slane %v435, 4
        %v438 = vshll.u32 %v269, 16
        %v440 = vrot.slane %v438, 5
        %v441 = vor.u32 %v437, %v440
        %v442 = vrot.slane %v441, 4
        %v444 = vshll.u32 %v285, 16
        %v446 = vrot.slane %v444, 5
        %v447 = vsel %vm293, %v442, %v446
        %v449 = vshrl.u32 %v270, 16
        %v451 = vrot.slane %v449, 4
        %v452 = vshll.u32 %v270, 16
        %v454 = vrot.slane %v452, 5
        %v455 = vor.u32 %v451, %v454
        %v456 = vrot.slane %v455, 4
        %v458 = vshll.u32 %v286, 16
        %v460 = vrot.slane %v458, 5
        %v461 = vsel %vm293, %v456, %v460
        %v463 = vshrl.u32 %v271, 16
        %v465 = vrot.slane %v463, 4
        %v466 = vshll.u32 %v271, 16
        %v468 = vrot.slane %v466, 5
        %v469 = vor.u32 %v465, %v468
        %v470 = vrot.slane %v469, 4
        %v472 = vshll.u32 %v287, 16
        %v474 = vrot.slane %v472, 5
        %v475 = vsel %vm293, %v470, %v474
        %v477 = vshrl.u32 %v272, 16
        %v479 = vrot.slane %v477, 4
        %v480 = vshll.u32 %v272, 16
        %v482 = vrot.slane %v480, 5
        %v483 = vor.u32 %v479, %v482
        %v484 = vrot.slane %v483, 4
        %v486 = vshll.u32 %v288, 16
        %v488 = vrot.slane %v486, 5
        %v489 = vsel %vm293, %v484, %v488
        %v491 = vshrl.u32 %v273, 16
        %v493 = vrot.slane %v491, 4
        %v494 = vshll.u32 %v273, 16
        %v496 = vrot.slane %v494, 5
        %v497 = vor.u32 %v493, %v496
        %v498 = vrot.slane %v497, 4
        %v500 = vshll.u32 %v289, 16
        %v502 = vrot.slane %v500, 5
        %v503 = vsel %vm293, %v498, %v502
        %v505 = vshrl.u32 %v274, 16
        %v507 = vrot.slane %v505, 4
        %v508 = vshll.u32 %v274, 16
        %v510 = vrot.slane %v508, 5
        %v511 = vor.u32 %v507, %v510
        %v512 = vrot.slane %v511, 4
        %v514 = vshll.u32 %v290, 16
        %v516 = vrot.slane %v514, 5
        %v517 = vsel %vm293, %v512, %v516
        %v518 = vld [vmem:[%s257] sm:$0xf]
        %v519 = vld [vmem:[%s257 + $0x4] sm:$0xf]
        %v520 = vld [vmem:[%s257 + $0x8] sm:$0xf]
        %v521 = vld [vmem:[%s257 + $0xc] sm:$0xf]
        %v522 = vld [vmem:[%s257 + $0x10] sm:$0xf]
        %v523 = vld [vmem:[%s257 + $0x14] sm:$0xf]
        %v524 = vld [vmem:[%s257 + $0x18] sm:$0xf]
        %v525 = vld [vmem:[%s257 + $0x1c] sm:$0xf]
        %v526 = vld [vmem:[%s257 + $0x20] sm:$0xf]
        %v527 = vld [vmem:[%s257 + $0x24] sm:$0xf]
        %v528 = vld [vmem:[%s257 + $0x28] sm:$0xf]
        %v529 = vld [vmem:[%s257 + $0x2c] sm:$0xf]
        %v530 = vld [vmem:[%s257 + $0x30] sm:$0xf]
        %v531 = vld [vmem:[%s257 + $0x34] sm:$0xf]
        %v532 = vld [vmem:[%s257 + $0x38] sm:$0xf]
        %v533 = vld [vmem:[%s257 + $0x3c] sm:$0xf]
        %vm534 = vcmask 257024
        %535 = vst.msk [vmem:[#allocation2] sm:$0xf] %vm534, %v259
        %536 = vst.msk [vmem:[#allocation2 + $0x4] sm:$0xf] %vm534, %v260
        %537 = vst.msk [vmem:[#allocation2 + $0x8] sm:$0xf] %vm534, %v261
        %538 = vst.msk [vmem:[#allocation2 + $0xc] sm:$0xf] %vm534, %v262
        %539 = vst.msk [vmem:[#allocation2 + $0x10] sm:$0xf] %vm534, %v263
        %540 = vst.msk [vmem:[#allocation2 + $0x14] sm:$0xf] %vm534, %v264
        %541 = vst.msk [vmem:[#allocation2 + $0x18] sm:$0xf] %vm534, %v265
        %542 = vst.msk [vmem:[#allocation2 + $0x1c] sm:$0xf] %vm534, %v266
        %543 = vst.msk [vmem:[#allocation2 + $0x20] sm:$0xf] %vm534, %v267
        %544 = vst.msk [vmem:[#allocation2 + $0x24] sm:$0xf] %vm534, %v268
        %545 = vst.msk [vmem:[#allocation2 + $0x28] sm:$0xf] %vm534, %v269
        %546 = vst.msk [vmem:[#allocation2 + $0x2c] sm:$0xf] %vm534, %v270
        %547 = vst.msk [vmem:[#allocation2 + $0x30] sm:$0xf] %vm534, %v271
        %548 = vst.msk [vmem:[#allocation2 + $0x34] sm:$0xf] %vm534, %v272
        %549 = vst.msk [vmem:[#allocation2 + $0x38] sm:$0xf] %vm534, %v273
        %550 = vst.msk [vmem:[#allocation2 + $0x3c] sm:$0xf] %vm534, %v274
        %567 = vrot.lane.b32.xlu0 %v518, 32
        %v568 = vpop.permute.xlu0 %567
        %569 = vrot.lane.b32.xlu0 %v519, 32
        %v570 = vpop.permute.xlu0 %569
        %571 = vrot.lane.b32.xlu0 %v520, 32
        %v572 = vpop.permute.xlu0 %571
        %573 = vrot.lane.b32.xlu0 %v521, 32
        %v574 = vpop.permute.xlu0 %573
        %575 = vrot.lane.b32.xlu0 %v522, 32
        %v576 = vpop.permute.xlu0 %575
        %577 = vrot.lane.b32.xlu0 %v523, 32
        %v578 = vpop.permute.xlu0 %577
        %579 = vrot.lane.b32.xlu0 %v524, 32
        %v580 = vpop.permute.xlu0 %579
        %581 = vrot.lane.b32.xlu0 %v525, 32
        %v582 = vpop.permute.xlu0 %581
        %583 = vrot.lane.b32.xlu0 %v526, 32
        %v584 = vpop.permute.xlu0 %583
        %585 = vrot.lane.b32.xlu0 %v527, 32
        %v586 = vpop.permute.xlu0 %585
        %587 = vrot.lane.b32.xlu0 %v528, 32
        %v588 = vpop.permute.xlu0 %587
        %589 = vrot.lane.b32.xlu0 %v529, 32
        %v590 = vpop.permute.xlu0 %589
        %591 = vrot.lane.b32.xlu0 %v530, 32
        %v592 = vpop.permute.xlu0 %591
        %593 = vrot.lane.b32.xlu0 %v531, 32
        %v594 = vpop.permute.xlu0 %593
        %595 = vrot.lane.b32.xlu0 %v532, 32
        %v596 = vpop.permute.xlu0 %595
        %597 = vrot.lane.b32.xlu0 %v533, 32
        %v598 = vpop.permute.xlu0 %597
        %vm615 = vcmask 519424
        %616 = vst.msk [vmem:[#allocation2] sm:$0xf] %vm615, %v568
        %617 = vst.msk [vmem:[#allocation2 + $0x4] sm:$0xf] %vm615, %v570
        %618 = vst.msk [vmem:[#allocation2 + $0x8] sm:$0xf] %vm615, %v572
        %619 = vst.msk [vmem:[#allocation2 + $0xc] sm:$0xf] %vm615, %v574
        %620 = vst.msk [vmem:[#allocation2 + $0x10] sm:$0xf] %vm615, %v576
        %621 = vst.msk [vmem:[#allocation2 + $0x14] sm:$0xf] %vm615, %v578
        %622 = vst.msk [vmem:[#allocation2 + $0x18] sm:$0xf] %vm615, %v580
        %623 = vst.msk [vmem:[#allocation2 + $0x1c] sm:$0xf] %vm615, %v582
        %624 = vst.msk [vmem:[#allocation2 + $0x20] sm:$0xf] %vm615, %v584
        %625 = vst.msk [vmem:[#allocation2 + $0x24] sm:$0xf] %vm615, %v586
        %626 = vst.msk [vmem:[#allocation2 + $0x28] sm:$0xf] %vm615, %v588
        %627 = vst.msk [vmem:[#allocation2 + $0x2c] sm:$0xf] %vm615, %v590
        %628 = vst.msk [vmem:[#allocation2 + $0x30] sm:$0xf] %vm615, %v592
        %629 = vst.msk [vmem:[#allocation2 + $0x34] sm:$0xf] %vm615, %v594
        %630 = vst.msk [vmem:[#allocation2 + $0x38] sm:$0xf] %vm615, %v596
        %631 = vst.msk [vmem:[#allocation2 + $0x3c] sm:$0xf] %vm615, %v598
        %632 = vst.msk [vmem:[#allocation2 + $0x40] sm:$0xf] %vm534, %v518
        %633 = vst.msk [vmem:[#allocation2 + $0x44] sm:$0xf] %vm534, %v519
        %634 = vst.msk [vmem:[#allocation2 + $0x48] sm:$0xf] %vm534, %v520
        %635 = vst.msk [vmem:[#allocation2 + $0x4c] sm:$0xf] %vm534, %v521
        %636 = vst.msk [vmem:[#allocation2 + $0x50] sm:$0xf] %vm534, %v522
        %637 = vst.msk [vmem:[#allocation2 + $0x54] sm:$0xf] %vm534, %v523
        %638 = vst.msk [vmem:[#allocation2 + $0x58] sm:$0xf] %vm534, %v524
        %639 = vst.msk [vmem:[#allocation2 + $0x5c] sm:$0xf] %vm534, %v525
        %640 = vst.msk [vmem:[#allocation2 + $0x60] sm:$0xf] %vm534, %v526
        %641 = vst.msk [vmem:[#allocation2 + $0x64] sm:$0xf] %vm534, %v527
        %642 = vst.msk [vmem:[#allocation2 + $0x68] sm:$0xf] %vm534, %v528
        %643 = vst.msk [vmem:[#allocation2 + $0x6c] sm:$0xf] %vm534, %v529
        %644 = vst.msk [vmem:[#allocation2 + $0x70] sm:$0xf] %vm534, %v530
        %645 = vst.msk [vmem:[#allocation2 + $0x74] sm:$0xf] %vm534, %v531
        %646 = vst.msk [vmem:[#allocation2 + $0x78] sm:$0xf] %vm534, %v532
        %647 = vst.msk [vmem:[#allocation2 + $0x7c] sm:$0xf] %vm534, %v533
        %648 = vrot.lane.b32.xlu0 %v307, 32
        %v649 = vpop.permute.xlu0 %648
        %650 = vrot.lane.b32.xlu0 %v321, 32
        %v651 = vpop.permute.xlu0 %650
        %652 = vrot.lane.b32.xlu0 %v335, 32
        %v653 = vpop.permute.xlu0 %652
        %654 = vrot.lane.b32.xlu0 %v349, 32
        %v655 = vpop.permute.xlu0 %654
        %656 = vrot.lane.b32.xlu0 %v363, 32
        %v657 = vpop.permute.xlu0 %656
        %658 = vrot.lane.b32.xlu0 %v377, 32
        %v659 = vpop.permute.xlu0 %658
        %660 = vrot.lane.b32.xlu0 %v391, 32
        %v661 = vpop.permute.xlu0 %660
        %662 = vrot.lane.b32.xlu0 %v405, 32
        %v663 = vpop.permute.xlu0 %662
        %664 = vrot.lane.b32.xlu0 %v419, 32
        %v665 = vpop.permute.xlu0 %664
        %666 = vrot.lane.b32.xlu0 %v433, 32
        %v667 = vpop.permute.xlu0 %666
        %668 = vrot.lane.b32.xlu0 %v447, 32
        %v669 = vpop.permute.xlu0 %668
        %670 = vrot.lane.b32.xlu0 %v461, 32
        %v671 = vpop.permute.xlu0 %670
        %672 = vrot.lane.b32.xlu0 %v475, 32
        %v673 = vpop.permute.xlu0 %672
        %674 = vrot.lane.b32.xlu0 %v489, 32
        %v675 = vpop.permute.xlu0 %674
        %676 = vrot.lane.b32.xlu0 %v503, 32
        %v677 = vpop.permute.xlu0 %676
        %678 = vrot.lane.b32.xlu0 %v517, 32
        %v679 = vpop.permute.xlu0 %678
        %696 = vst.msk [vmem:[#allocation2 + $0x40] sm:$0xf] %vm615, %v649
        %697 = vst.msk [vmem:[#allocation2 + $0x44] sm:$0xf] %vm615, %v651
        %698 = vst.msk [vmem:[#allocation2 + $0x48] sm:$0xf] %vm615, %v653
        %699 = vst.msk [vmem:[#allocation2 + $0x4c] sm:$0xf] %vm615, %v655
        %700 = vst.msk [vmem:[#allocation2 + $0x50] sm:$0xf] %vm615, %v657
        %701 = vst.msk [vmem:[#allocation2 + $0x54] sm:$0xf] %vm615, %v659
        %702 = vst.msk [vmem:[#allocation2 + $0x58] sm:$0xf] %vm615, %v661
        %703 = vst.msk [vmem:[#allocation2 + $0x5c] sm:$0xf] %vm615, %v663
        %704 = vst.msk [vmem:[#allocation2 + $0x60] sm:$0xf] %vm615, %v665
        %705 = vst.msk [vmem:[#allocation2 + $0x64] sm:$0xf] %vm615, %v667
        %706 = vst.msk [vmem:[#allocation2 + $0x68] sm:$0xf] %vm615, %v669
        %707 = vst.msk [vmem:[#allocation2 + $0x6c] sm:$0xf] %vm615, %v671
        %708 = vst.msk [vmem:[#allocation2 + $0x70] sm:$0xf] %vm615, %v673
        %709 = vst.msk [vmem:[#allocation2 + $0x74] sm:$0xf] %vm615, %v675
        %710 = vst.msk [vmem:[#allocation2 + $0x78] sm:$0xf] %vm615, %v677
        %711 = vst.msk [vmem:[#allocation2 + $0x7c] sm:$0xf] %vm615, %v679
        %s712 = scalar_lea.vmem %s248, 8
        %v713 = vld [vmem:[%s712] sm:$0xf]
        %v714 = vld [vmem:[%s712 + $0x8] sm:$0xf]
        %v715 = vld [vmem:[%s712 + $0x10] sm:$0xf]
        %v716 = vld [vmem:[%s712 + $0x18] sm:$0xf]
        %v717 = vld [vmem:[%s712 + $0x20] sm:$0xf]
        %v718 = vld [vmem:[%s712 + $0x28] sm:$0xf]
        %v719 = vld [vmem:[%s712 + $0x30] sm:$0xf]
        %v720 = vld [vmem:[%s712 + $0x38] sm:$0xf]
        %v721 = vld [vmem:[%s712 + $0x40] sm:$0xf]
        %v722 = vld [vmem:[%s712 + $0x48] sm:$0xf]
        %v723 = vld [vmem:[%s712 + $0x50] sm:$0xf]
        %v724 = vld [vmem:[%s712 + $0x58] sm:$0xf]
        %v725 = vld [vmem:[%s712 + $0x60] sm:$0xf]
        %v726 = vld [vmem:[%s712 + $0x68] sm:$0xf]
        %v727 = vld [vmem:[%s712 + $0x70] sm:$0xf]
        %v728 = vld [vmem:[%s712 + $0x78] sm:$0xf]
        %v729 = vld [vmem:[%s712 + $0x4] sm:$0x1]
        %v730 = vld [vmem:[%s712 + $0xc] sm:$0x1]
        %v731 = vld [vmem:[%s712 + $0x14] sm:$0x1]
        %v732 = vld [vmem:[%s712 + $0x1c] sm:$0x1]
        %v733 = vld [vmem:[%s712 + $0x24] sm:$0x1]
        %v734 = vld [vmem:[%s712 + $0x2c] sm:$0x1]
        %v735 = vld [vmem:[%s712 + $0x34] sm:$0x1]
        %v736 = vld [vmem:[%s712 + $0x3c] sm:$0x1]
        %v737 = vld [vmem:[%s712 + $0x44] sm:$0x1]
        %v738 = vld [vmem:[%s712 + $0x4c] sm:$0x1]
        %v739 = vld [vmem:[%s712 + $0x54] sm:$0x1]
        %v740 = vld [vmem:[%s712 + $0x5c] sm:$0x1]
        %v741 = vld [vmem:[%s712 + $0x64] sm:$0x1]
        %v742 = vld [vmem:[%s712 + $0x6c] sm:$0x1]
        %v743 = vld [vmem:[%s712 + $0x74] sm:$0x1]
        %v744 = vld [vmem:[%s712 + $0x7c] sm:$0x1]
        %v746 = vshrl.u32 %v713, 16
        %v748 = vrot.slane %v746, 4
        %v749 = vshll.u32 %v713, 16
        %v751 = vrot.slane %v749, 5
        %v752 = vor.u32 %v748, %v751
        %v753 = vrot.slane %v752, 4
        %v755 = vshll.u32 %v729, 16
        %v757 = vrot.slane %v755, 5
        %v758 = vsel %vm293, %v753, %v757
        %v760 = vshrl.u32 %v714, 16
        %v762 = vrot.slane %v760, 4
        %v763 = vshll.u32 %v714, 16
        %v765 = vrot.slane %v763, 5
        %v766 = vor.u32 %v762, %v765
        %v767 = vrot.slane %v766, 4
        %v769 = vshll.u32 %v730, 16
        %v771 = vrot.slane %v769, 5
        %v772 = vsel %vm293, %v767, %v771
        %v774 = vshrl.u32 %v715, 16
        %v776 = vrot.slane %v774, 4
        %v777 = vshll.u32 %v715, 16
        %v779 = vrot.slane %v777, 5
        %v780 = vor.u32 %v776, %v779
        %v781 = vrot.slane %v780, 4
        %v783 = vshll.u32 %v731, 16
        %v785 = vrot.slane %v783, 5
        %v786 = vsel %vm293, %v781, %v785
        %v788 = vshrl.u32 %v716, 16
        %v790 = vrot.slane %v788, 4
        %v791 = vshll.u32 %v716, 16
        %v793 = vrot.slane %v791, 5
        %v794 = vor.u32 %v790, %v793
        %v795 = vrot.slane %v794, 4
        %v797 = vshll.u32 %v732, 16
        %v799 = vrot.slane %v797, 5
        %v800 = vsel %vm293, %v795, %v799
        %v802 = vshrl.u32 %v717, 16
        %v804 = vrot.slane %v802, 4
        %v805 = vshll.u32 %v717, 16
        %v807 = vrot.slane %v805, 5
        %v808 = vor.u32 %v804, %v807
        %v809 = vrot.slane %v808, 4
        %v811 = vshll.u32 %v733, 16
        %v813 = vrot.slane %v811, 5
        %v814 = vsel %vm293, %v809, %v813
        %v816 = vshrl.u32 %v718, 16
        %v818 = vrot.slane %v816, 4
        %v819 = vshll.u32 %v718, 16
        %v821 = vrot.slane %v819, 5
        %v822 = vor.u32 %v818, %v821
        %v823 = vrot.slane %v822, 4
        %v825 = vshll.u32 %v734, 16
        %v827 = vrot.slane %v825, 5
        %v828 = vsel %vm293, %v823, %v827
        %v830 = vshrl.u32 %v719, 16
        %v832 = vrot.slane %v830, 4
        %v833 = vshll.u32 %v719, 16
        %v835 = vrot.slane %v833, 5
        %v836 = vor.u32 %v832, %v835
        %v837 = vrot.slane %v836, 4
        %v839 = vshll.u32 %v735, 16
        %v841 = vrot.slane %v839, 5
        %v842 = vsel %vm293, %v837, %v841
        %v844 = vshrl.u32 %v720, 16
        %v846 = vrot.slane %v844, 4
        %v847 = vshll.u32 %v720, 16
        %v849 = vrot.slane %v847, 5
        %v850 = vor.u32 %v846, %v849
        %v851 = vrot.slane %v850, 4
        %v853 = vshll.u32 %v736, 16
        %v855 = vrot.slane %v853, 5
        %v856 = vsel %vm293, %v851, %v855
        %v858 = vshrl.u32 %v721, 16
        %v860 = vrot.slane %v858, 4
        %v861 = vshll.u32 %v721, 16
        %v863 = vrot.slane %v861, 5
        %v864 = vor.u32 %v860, %v863
        %v865 = vrot.slane %v864, 4
        %v867 = vshll.u32 %v737, 16
        %v869 = vrot.slane %v867, 5
        %v870 = vsel %vm293, %v865, %v869
        %v872 = vshrl.u32 %v722, 16
        %v874 = vrot.slane %v872, 4
        %v875 = vshll.u32 %v722, 16
        %v877 = vrot.slane %v875, 5
        %v878 = vor.u32 %v874, %v877
        %v879 = vrot.slane %v878, 4
        %v881 = vshll.u32 %v738, 16
        %v883 = vrot.slane %v881, 5
        %v884 = vsel %vm293, %v879, %v883
        %v886 = vshrl.u32 %v723, 16
        %v888 = vrot.slane %v886, 4
        %v889 = vshll.u32 %v723, 16
        %v891 = vrot.slane %v889, 5
        %v892 = vor.u32 %v888, %v891
        %v893 = vrot.slane %v892, 4
        %v895 = vshll.u32 %v739, 16
        %v897 = vrot.slane %v895, 5
        %v898 = vsel %vm293, %v893, %v897
        %v900 = vshrl.u32 %v724, 16
        %v902 = vrot.slane %v900, 4
        %v903 = vshll.u32 %v724, 16
        %v905 = vrot.slane %v903, 5
        %v906 = vor.u32 %v902, %v905
        %v907 = vrot.slane %v906, 4
        %v909 = vshll.u32 %v740, 16
        %v911 = vrot.slane %v909, 5
        %v912 = vsel %vm293, %v907, %v911
        %v914 = vshrl.u32 %v725, 16
        %v916 = vrot.slane %v914, 4
        %v917 = vshll.u32 %v725, 16
        %v919 = vrot.slane %v917, 5
        %v920 = vor.u32 %v916, %v919
        %v921 = vrot.slane %v920, 4
        %v923 = vshll.u32 %v741, 16
        %v925 = vrot.slane %v923, 5
        %v926 = vsel %vm293, %v921, %v925
        %v928 = vshrl.u32 %v726, 16
        %v930 = vrot.slane %v928, 4
        %v931 = vshll.u32 %v726, 16
        %v933 = vrot.slane %v931, 5
        %v934 = vor.u32 %v930, %v933
        %v935 = vrot.slane %v934, 4
        %v937 = vshll.u32 %v742, 16
        %v939 = vrot.slane %v937, 5
        %v940 = vsel %vm293, %v935, %v939
        %v942 = vshrl.u32 %v727, 16
        %v944 = vrot.slane %v942, 4
        %v945 = vshll.u32 %v727, 16
        %v947 = vrot.slane %v945, 5
        %v948 = vor.u32 %v944, %v947
        %v949 = vrot.slane %v948, 4
        %v951 = vshll.u32 %v743, 16
        %v953 = vrot.slane %v951, 5
        %v954 = vsel %vm293, %v949, %v953
        %v956 = vshrl.u32 %v728, 16
        %v958 = vrot.slane %v956, 4
        %v959 = vshll.u32 %v728, 16
        %v961 = vrot.slane %v959, 5
        %v962 = vor.u32 %v958, %v961
        %v963 = vrot.slane %v962, 4
        %v965 = vshll.u32 %v744, 16
        %v967 = vrot.slane %v965, 5
        %v968 = vsel %vm293, %v963, %v967
        %s969 = scalar_lea.vmem %s257, 4
        %v970 = vld [vmem:[%s969] sm:$0xf]
        %v971 = vld [vmem:[%s969 + $0x4] sm:$0xf]
        %v972 = vld [vmem:[%s969 + $0x8] sm:$0xf]
        %v973 = vld [vmem:[%s969 + $0xc] sm:$0xf]
        %v974 = vld [vmem:[%s969 + $0x10] sm:$0xf]
        %v975 = vld [vmem:[%s969 + $0x14] sm:$0xf]
        %v976 = vld [vmem:[%s969 + $0x18] sm:$0xf]
        %v977 = vld [vmem:[%s969 + $0x1c] sm:$0xf]
        %v978 = vld [vmem:[%s969 + $0x20] sm:$0xf]
        %v979 = vld [vmem:[%s969 + $0x24] sm:$0xf]
        %v980 = vld [vmem:[%s969 + $0x28] sm:$0xf]
        %v981 = vld [vmem:[%s969 + $0x2c] sm:$0xf]
        %v982 = vld [vmem:[%s969 + $0x30] sm:$0xf]
        %v983 = vld [vmem:[%s969 + $0x34] sm:$0xf]
        %v984 = vld [vmem:[%s969 + $0x38] sm:$0xf]
        %v985 = vld [vmem:[%s969 + $0x3c] sm:$0xf]
        %1002 = vrot.lane.b32.xlu0 %v713, 64
        %v1003 = vpop.permute.xlu0 %1002
        %1004 = vrot.lane.b32.xlu0 %v714, 64
        %v1005 = vpop.permute.xlu0 %1004
        %1006 = vrot.lane.b32.xlu0 %v715, 64
        %v1007 = vpop.permute.xlu0 %1006
        %1008 = vrot.lane.b32.xlu0 %v716, 64
        %v1009 = vpop.permute.xlu0 %1008
        %1010 = vrot.lane.b32.xlu0 %v717, 64
        %v1011 = vpop.permute.xlu0 %1010
        %1012 = vrot.lane.b32.xlu0 %v718, 64
        %v1013 = vpop.permute.xlu0 %1012
        %1014 = vrot.lane.b32.xlu0 %v719, 64
        %v1015 = vpop.permute.xlu0 %1014
        %1016 = vrot.lane.b32.xlu0 %v720, 64
        %v1017 = vpop.permute.xlu0 %1016
        %1018 = vrot.lane.b32.xlu0 %v721, 64
        %v1019 = vpop.permute.xlu0 %1018
        %1020 = vrot.lane.b32.xlu0 %v722, 64
        %v1021 = vpop.permute.xlu0 %1020
        %1022 = vrot.lane.b32.xlu0 %v723, 64
        %v1023 = vpop.permute.xlu0 %1022
        %1024 = vrot.lane.b32.xlu0 %v724, 64
        %v1025 = vpop.permute.xlu0 %1024
        %1026 = vrot.lane.b32.xlu0 %v725, 64
        %v1027 = vpop.permute.xlu0 %1026
        %1028 = vrot.lane.b32.xlu0 %v726, 64
        %v1029 = vpop.permute.xlu0 %1028
        %1030 = vrot.lane.b32.xlu0 %v727, 64
        %v1031 = vpop.permute.xlu0 %1030
        %1032 = vrot.lane.b32.xlu0 %v728, 64
        %v1033 = vpop.permute.xlu0 %1032
        %vm1050 = vcmask 781824
        %1051 = vst.msk [vmem:[#allocation2] sm:$0xf] %vm1050, %v1003
        %1052 = vst.msk [vmem:[#allocation2 + $0x4] sm:$0xf] %vm1050, %v1005
        %1053 = vst.msk [vmem:[#allocation2 + $0x8] sm:$0xf] %vm1050, %v1007
        %1054 = vst.msk [vmem:[#allocation2 + $0xc] sm:$0xf] %vm1050, %v1009
        %1055 = vst.msk [vmem:[#allocation2 + $0x10] sm:$0xf] %vm1050, %v1011
        %1056 = vst.msk [vmem:[#allocation2 + $0x14] sm:$0xf] %vm1050, %v1013
        %1057 = vst.msk [vmem:[#allocation2 + $0x18] sm:$0xf] %vm1050, %v1015
        %1058 = vst.msk [vmem:[#allocation2 + $0x1c] sm:$0xf] %vm1050, %v1017
        %1059 = vst.msk [vmem:[#allocation2 + $0x20] sm:$0xf] %vm1050, %v1019
        %1060 = vst.msk [vmem:[#allocation2 + $0x24] sm:$0xf] %vm1050, %v1021
        %1061 = vst.msk [vmem:[#allocation2 + $0x28] sm:$0xf] %vm1050, %v1023
        %1062 = vst.msk [vmem:[#allocation2 + $0x2c] sm:$0xf] %vm1050, %v1025
        %1063 = vst.msk [vmem:[#allocation2 + $0x30] sm:$0xf] %vm1050, %v1027
        %1064 = vst.msk [vmem:[#allocation2 + $0x34] sm:$0xf] %vm1050, %v1029
        %1065 = vst.msk [vmem:[#allocation2 + $0x38] sm:$0xf] %vm1050, %v1031
        %1066 = vst.msk [vmem:[#allocation2 + $0x3c] sm:$0xf] %vm1050, %v1033
        %1083 = vrot.lane.b32.xlu0 %v970, 96
        %v1084 = vpop.permute.xlu0 %1083
        %1085 = vrot.lane.b32.xlu0 %v971, 96
        %v1086 = vpop.permute.xlu0 %1085
        %1087 = vrot.lane.b32.xlu0 %v972, 96
        %v1088 = vpop.permute.xlu0 %1087
        %1089 = vrot.lane.b32.xlu0 %v973, 96
        %v1090 = vpop.permute.xlu0 %1089
        %1091 = vrot.lane.b32.xlu0 %v974, 96
        %v1092 = vpop.permute.xlu0 %1091
        %1093 = vrot.lane.b32.xlu0 %v975, 96
        %v1094 = vpop.permute.xlu0 %1093
        %1095 = vrot.lane.b32.xlu0 %v976, 96
        %v1096 = vpop.permute.xlu0 %1095
        %1097 = vrot.lane.b32.xlu0 %v977, 96
        %v1098 = vpop.permute.xlu0 %1097
        %1099 = vrot.lane.b32.xlu0 %v978, 96
        %v1100 = vpop.permute.xlu0 %1099
        %1101 = vrot.lane.b32.xlu0 %v979, 96
        %v1102 = vpop.permute.xlu0 %1101
        %1103 = vrot.lane.b32.xlu0 %v980, 96
        %v1104 = vpop.permute.xlu0 %1103
        %1105 = vrot.lane.b32.xlu0 %v981, 96
        %v1106 = vpop.permute.xlu0 %1105
        %1107 = vrot.lane.b32.xlu0 %v982, 96
        %v1108 = vpop.permute.xlu0 %1107
        %1109 = vrot.lane.b32.xlu0 %v983, 96
        %v1110 = vpop.permute.xlu0 %1109
        %1111 = vrot.lane.b32.xlu0 %v984, 96
        %v1112 = vpop.permute.xlu0 %1111
        %1113 = vrot.lane.b32.xlu0 %v985, 96
        %v1114 = vpop.permute.xlu0 %1113
        %vm1131 = vcmask 1044224
        %1132 = vst.msk [vmem:[#allocation2] sm:$0xf] %vm1131, %v1084
        %1133 = vst.msk [vmem:[#allocation2 + $0x4] sm:$0xf] %vm1131, %v1086
        %1134 = vst.msk [vmem:[#allocation2 + $0x8] sm:$0xf] %vm1131, %v1088
        %1135 = vst.msk [vmem:[#allocation2 + $0xc] sm:$0xf] %vm1131, %v1090
        %1136 = vst.msk [vmem:[#allocation2 + $0x10] sm:$0xf] %vm1131, %v1092
        %1137 = vst.msk [vmem:[#allocation2 + $0x14] sm:$0xf] %vm1131, %v1094
        %1138 = vst.msk [vmem:[#allocation2 + $0x18] sm:$0xf] %vm1131, %v1096
        %1139 = vst.msk [vmem:[#allocation2 + $0x1c] sm:$0xf] %vm1131, %v1098
        %1140 = vst.msk [vmem:[#allocation2 + $0x20] sm:$0xf] %vm1131, %v1100
        %1141 = vst.msk [vmem:[#allocation2 + $0x24] sm:$0xf] %vm1131, %v1102
        %1142 = vst.msk [vmem:[#allocation2 + $0x28] sm:$0xf] %vm1131, %v1104
        %1143 = vst.msk [vmem:[#allocation2 + $0x2c] sm:$0xf] %vm1131, %v1106
        %1144 = vst.msk [vmem:[#allocation2 + $0x30] sm:$0xf] %vm1131, %v1108
        %1145 = vst.msk [vmem:[#allocation2 + $0x34] sm:$0xf] %vm1131, %v1110
        %1146 = vst.msk [vmem:[#allocation2 + $0x38] sm:$0xf] %vm1131, %v1112
        %1147 = vst.msk [vmem:[#allocation2 + $0x3c] sm:$0xf] %vm1131, %v1114
        %1148 = vrot.lane.b32.xlu0 %v970, 64
        %v1149 = vpop.permute.xlu0 %1148
        %1150 = vrot.lane.b32.xlu0 %v971, 64
        %v1151 = vpop.permute.xlu0 %1150
        %1152 = vrot.lane.b32.xlu0 %v972, 64
        %v1153 = vpop.permute.xlu0 %1152
        %1154 = vrot.lane.b32.xlu0 %v973, 64
        %v1155 = vpop.permute.xlu0 %1154
        %1156 = vrot.lane.b32.xlu0 %v974, 64
        %v1157 = vpop.permute.xlu0 %1156
        %1158 = vrot.lane.b32.xlu0 %v975, 64
        %v1159 = vpop.permute.xlu0 %1158
        %1160 = vrot.lane.b32.xlu0 %v976, 64
        %v1161 = vpop.permute.xlu0 %1160
        %1162 = vrot.lane.b32.xlu0 %v977, 64
        %v1163 = vpop.permute.xlu0 %1162
        %1164 = vrot.lane.b32.xlu0 %v978, 64
        %v1165 = vpop.permute.xlu0 %1164
        %1166 = vrot.lane.b32.xlu0 %v979, 64
        %v1167 = vpop.permute.xlu0 %1166
        %1168 = vrot.lane.b32.xlu0 %v980, 64
        %v1169 = vpop.permute.xlu0 %1168
        %1170 = vrot.lane.b32.xlu0 %v981, 64
        %v1171 = vpop.permute.xlu0 %1170
        %1172 = vrot.lane.b32.xlu0 %v982, 64
        %v1173 = vpop.permute.xlu0 %1172
        %1174 = vrot.lane.b32.xlu0 %v983, 64
        %v1175 = vpop.permute.xlu0 %1174
        %1176 = vrot.lane.b32.xlu0 %v984, 64
        %v1177 = vpop.permute.xlu0 %1176
        %1178 = vrot.lane.b32.xlu0 %v985, 64
        %v1179 = vpop.permute.xlu0 %1178
        %1196 = vst.msk [vmem:[#allocation2 + $0x40] sm:$0xf] %vm1050, %v1149
        %1197 = vst.msk [vmem:[#allocation2 + $0x44] sm:$0xf] %vm1050, %v1151
        %1198 = vst.msk [vmem:[#allocation2 + $0x48] sm:$0xf] %vm1050, %v1153
        %1199 = vst.msk [vmem:[#allocation2 + $0x4c] sm:$0xf] %vm1050, %v1155
        %1200 = vst.msk [vmem:[#allocation2 + $0x50] sm:$0xf] %vm1050, %v1157
        %1201 = vst.msk [vmem:[#allocation2 + $0x54] sm:$0xf] %vm1050, %v1159
        %1202 = vst.msk [vmem:[#allocation2 + $0x58] sm:$0xf] %vm1050, %v1161
        %1203 = vst.msk [vmem:[#allocation2 + $0x5c] sm:$0xf] %vm1050, %v1163
        %1204 = vst.msk [vmem:[#allocation2 + $0x60] sm:$0xf] %vm1050, %v1165
        %1205 = vst.msk [vmem:[#allocation2 + $0x64] sm:$0xf] %vm1050, %v1167
        %1206 = vst.msk [vmem:[#allocation2 + $0x68] sm:$0xf] %vm1050, %v1169
        %1207 = vst.msk [vmem:[#allocation2 + $0x6c] sm:$0xf] %vm1050, %v1171
        %1208 = vst.msk [vmem:[#allocation2 + $0x70] sm:$0xf] %vm1050, %v1173
        %1209 = vst.msk [vmem:[#allocation2 + $0x74] sm:$0xf] %vm1050, %v1175
        %1210 = vst.msk [vmem:[#allocation2 + $0x78] sm:$0xf] %vm1050, %v1177
        %1211 = vst.msk [vmem:[#allocation2 + $0x7c] sm:$0xf] %vm1050, %v1179
        %1212 = vrot.lane.b32.xlu0 %v758, 96
        %v1213 = vpop.permute.xlu0 %1212
        %1214 = vrot.lane.b32.xlu0 %v772, 96
        %v1215 = vpop.permute.xlu0 %1214
        %1216 = vrot.lane.b32.xlu0 %v786, 96
        %v1217 = vpop.permute.xlu0 %1216
        %1218 = vrot.lane.b32.xlu0 %v800, 96
        %v1219 = vpop.permute.xlu0 %1218
        %1220 = vrot.lane.b32.xlu0 %v814, 96
        %v1221 = vpop.permute.xlu0 %1220
        %1222 = vrot.lane.b32.xlu0 %v828, 96
        %v1223 = vpop.permute.xlu0 %1222
        %1224 = vrot.lane.b32.xlu0 %v842, 96
        %v1225 = vpop.permute.xlu0 %1224
        %1226 = vrot.lane.b32.xlu0 %v856, 96
        %v1227 = vpop.permute.xlu0 %1226
        %1228 = vrot.lane.b32.xlu0 %v870, 96
        %v1229 = vpop.permute.xlu0 %1228
        %1230 = vrot.lane.b32.xlu0 %v884, 96
        %v1231 = vpop.permute.xlu0 %1230
        %1232 = vrot.lane.b32.xlu0 %v898, 96
        %v1233 = vpop.permute.xlu0 %1232
        %1234 = vrot.lane.b32.xlu0 %v912, 96
        %v1235 = vpop.permute.xlu0 %1234
        %1236 = vrot.lane.b32.xlu0 %v926, 96
        %v1237 = vpop.permute.xlu0 %1236
        %1238 = vrot.lane.b32.xlu0 %v940, 96
        %v1239 = vpop.permute.xlu0 %1238
        %1240 = vrot.lane.b32.xlu0 %v954, 96
        %v1241 = vpop.permute.xlu0 %1240
        %1242 = vrot.lane.b32.xlu0 %v968, 96
        %v1243 = vpop.permute.xlu0 %1242
        %1260 = vst.msk [vmem:[#allocation2 + $0x40] sm:$0xf] %vm1131, %v1213
        %1261 = vst.msk [vmem:[#allocation2 + $0x44] sm:$0xf] %vm1131, %v1215
        %1262 = vst.msk [vmem:[#allocation2 + $0x48] sm:$0xf] %vm1131, %v1217
        %1263 = vst.msk [vmem:[#allocation2 + $0x4c] sm:$0xf] %vm1131, %v1219
        %1264 = vst.msk [vmem:[#allocation2 + $0x50] sm:$0xf] %vm1131, %v1221
        %1265 = vst.msk [vmem:[#allocation2 + $0x54] sm:$0xf] %vm1131, %v1223
        %1266 = vst.msk [vmem:[#allocation2 + $0x58] sm:$0xf] %vm1131, %v1225
        %1267 = vst.msk [vmem:[#allocation2 + $0x5c] sm:$0xf] %vm1131, %v1227
        %1268 = vst.msk [vmem:[#allocation2 + $0x60] sm:$0xf] %vm1131, %v1229
        %1269 = vst.msk [vmem:[#allocation2 + $0x64] sm:$0xf] %vm1131, %v1231
        %1270 = vst.msk [vmem:[#allocation2 + $0x68] sm:$0xf] %vm1131, %v1233
        %1271 = vst.msk [vmem:[#allocation2 + $0x6c] sm:$0xf] %vm1131, %v1235
        %1272 = vst.msk [vmem:[#allocation2 + $0x70] sm:$0xf] %vm1131, %v1237
        %1273 = vst.msk [vmem:[#allocation2 + $0x74] sm:$0xf] %vm1131, %v1239
        %1274 = vst.msk [vmem:[#allocation2 + $0x78] sm:$0xf] %vm1131, %v1241
        %1275 = vst.msk [vmem:[#allocation2 + $0x7c] sm:$0xf] %vm1131, %v1243
        %v1276 = vld [vmem:[#allocation2] sm:$0xf]
        %v1277 = vld [vmem:[#allocation2 + $0x4] sm:$0xf]
        %v1278 = vld [vmem:[#allocation2 + $0x8] sm:$0xf]
        %v1279 = vld [vmem:[#allocation2 + $0xc] sm:$0xf]
        %v1280 = vld [vmem:[#allocation2 + $0x10] sm:$0xf]
        %v1281 = vld [vmem:[#allocation2 + $0x14] sm:$0xf]
        %v1282 = vld [vmem:[#allocation2 + $0x18] sm:$0xf]
        %v1283 = vld [vmem:[#allocation2 + $0x1c] sm:$0xf]
        %v1284 = vld [vmem:[#allocation2 + $0x20] sm:$0xf]
        %v1285 = vld [vmem:[#allocation2 + $0x24] sm:$0xf]
        %v1286 = vld [vmem:[#allocation2 + $0x28] sm:$0xf]
        %v1287 = vld [vmem:[#allocation2 + $0x2c] sm:$0xf]
        %v1288 = vld [vmem:[#allocation2 + $0x30] sm:$0xf]
        %v1289 = vld [vmem:[#allocation2 + $0x34] sm:$0xf]
        %v1290 = vld [vmem:[#allocation2 + $0x38] sm:$0xf]
        %v1291 = vld [vmem:[#allocation2 + $0x3c] sm:$0xf]
        %v1292 = vld [vmem:[#allocation2 + $0x40] sm:$0xf]
        %v1293 = vld [vmem:[#allocation2 + $0x44] sm:$0xf]
        %v1294 = vld [vmem:[#allocation2 + $0x48] sm:$0xf]
        %v1295 = vld [vmem:[#allocation2 + $0x4c] sm:$0xf]
        %v1296 = vld [vmem:[#allocation2 + $0x50] sm:$0xf]
        %v1297 = vld [vmem:[#allocation2 + $0x54] sm:$0xf]
        %v1298 = vld [vmem:[#allocation2 + $0x58] sm:$0xf]
        %v1299 = vld [vmem:[#allocation2 + $0x5c] sm:$0xf]
        %v1300 = vld [vmem:[#allocation2 + $0x60] sm:$0xf]
        %v1301 = vld [vmem:[#allocation2 + $0x64] sm:$0xf]
        %v1302 = vld [vmem:[#allocation2 + $0x68] sm:$0xf]
        %v1303 = vld [vmem:[#allocation2 + $0x6c] sm:$0xf]
        %v1304 = vld [vmem:[#allocation2 + $0x70] sm:$0xf]
        %v1305 = vld [vmem:[#allocation2 + $0x74] sm:$0xf]
        %v1306 = vld [vmem:[#allocation2 + $0x78] sm:$0xf]
        %v1307 = vld [vmem:[#allocation2 + $0x7c] sm:$0xf]
        %v1308 = vld [vmem:[%s2] sm:$0xf]
        %v1309 = vld [vmem:[%s2 + $0x4] sm:$0xf]
        %v1310 = vld [vmem:[%s2 + $0x8] sm:$0xf]
        %v1311 = vld [vmem:[%s2 + $0xc] sm:$0xf]
        %v1312 = vld [vmem:[%s2 + $0x10] sm:$0xf]
        %v1313 = vld [vmem:[%s2 + $0x14] sm:$0xf]
        %v1314 = vld [vmem:[%s2 + $0x18] sm:$0xf]
        %v1315 = vld [vmem:[%s2 + $0x1c] sm:$0xf]
        %v1316 = vld [vmem:[%s2 + $0x20] sm:$0xf]
        %v1317 = vld [vmem:[%s2 + $0x24] sm:$0xf]
        %v1318 = vld [vmem:[%s2 + $0x28] sm:$0xf]
        %v1319 = vld [vmem:[%s2 + $0x2c] sm:$0xf]
        %v1320 = vld [vmem:[%s2 + $0x30] sm:$0xf]
        %v1321 = vld [vmem:[%s2 + $0x34] sm:$0xf]
        %v1322 = vld [vmem:[%s2 + $0x38] sm:$0xf]
        %v1323 = vld [vmem:[%s2 + $0x3c] sm:$0xf]
        %v1356 = vunpack.c.l.b16 %v1276
        %v1357 = vunpack.c.l.b16 %v1277
        %v1358 = vunpack.c.l.b16 %v1278
        %v1359 = vunpack.c.l.b16 %v1279
        %v1360 = vunpack.c.l.b16 %v1280
        %v1361 = vunpack.c.l.b16 %v1281
        %v1362 = vunpack.c.l.b16 %v1282
        %v1363 = vunpack.c.l.b16 %v1283
        %v1364 = vunpack.c.l.b16 %v1284
        %v1365 = vunpack.c.l.b16 %v1285
        %v1366 = vunpack.c.l.b16 %v1286
        %v1367 = vunpack.c.l.b16 %v1287
        %v1368 = vunpack.c.l.b16 %v1288
        %v1369 = vunpack.c.l.b16 %v1289
        %v1370 = vunpack.c.l.b16 %v1290
        %v1371 = vunpack.c.l.b16 %v1291
        %v1372 = vunpack.c.l.b16 %v1292
        %v1373 = vunpack.c.l.b16 %v1293
        %v1374 = vunpack.c.l.b16 %v1294
        %v1375 = vunpack.c.l.b16 %v1295
        %v1376 = vunpack.c.l.b16 %v1296
        %v1377 = vunpack.c.l.b16 %v1297
        %v1378 = vunpack.c.l.b16 %v1298
        %v1379 = vunpack.c.l.b16 %v1299
        %v1380 = vunpack.c.l.b16 %v1300
        %v1381 = vunpack.c.l.b16 %v1301
        %v1382 = vunpack.c.l.b16 %v1302
        %v1383 = vunpack.c.l.b16 %v1303
        %v1384 = vunpack.c.l.b16 %v1304
        %v1385 = vunpack.c.l.b16 %v1305
        %v1386 = vunpack.c.l.b16 %v1306
        %v1387 = vunpack.c.l.b16 %v1307
        %v1388 = vpack.c.b16 %v1357, %v1356
        %v1389 = vpack.c.b16 %v1359, %v1358
        %v1390 = vpack.c.b16 %v1361, %v1360
        %v1391 = vpack.c.b16 %v1363, %v1362
        %v1392 = vpack.c.b16 %v1365, %v1364
        %v1393 = vpack.c.b16 %v1367, %v1366
        %v1394 = vpack.c.b16 %v1369, %v1368
        %v1395 = vpack.c.b16 %v1371, %v1370
        %v1396 = vpack.c.b16 %v1373, %v1372
        %v1397 = vpack.c.b16 %v1375, %v1374
        %v1398 = vpack.c.b16 %v1377, %v1376
        %v1399 = vpack.c.b16 %v1379, %v1378
        %v1400 = vpack.c.b16 %v1381, %v1380
        %v1401 = vpack.c.b16 %v1383, %v1382
        %v1402 = vpack.c.b16 %v1385, %v1384
        %v1403 = vpack.c.b16 %v1387, %v1386
        %v1436 = vunpack.c.l.b16 %v1308
        %v1437 = vunpack.c.l.b16 %v1309
        %v1438 = vunpack.c.l.b16 %v1310
        %v1439 = vunpack.c.l.b16 %v1311
        %v1440 = vunpack.c.l.b16 %v1312
        %v1441 = vunpack.c.l.b16 %v1313
        %v1442 = vunpack.c.l.b16 %v1314
        %v1443 = vunpack.c.l.b16 %v1315
        %v1444 = vunpack.c.l.b16 %v1316
        %v1445 = vunpack.c.l.b16 %v1317
        %v1446 = vunpack.c.l.b16 %v1318
        %v1447 = vunpack.c.l.b16 %v1319
        %v1448 = vunpack.c.l.b16 %v1320
        %v1449 = vunpack.c.l.b16 %v1321
        %v1450 = vunpack.c.l.b16 %v1322
        %v1451 = vunpack.c.l.b16 %v1323
        %v1452 = vpack.c.b16 %v1437, %v1436
        %v1453 = vpack.c.b16 %v1439, %v1438
        %v1454 = vpack.c.b16 %v1441, %v1440
        %v1455 = vpack.c.b16 %v1443, %v1442
        %v1456 = vpack.c.b16 %v1445, %v1444
        %v1457 = vpack.c.b16 %v1447, %v1446
        %v1458 = vpack.c.b16 %v1449, %v1448
        %v1459 = vpack.c.b16 %v1451, %v1450
        %1468 = vmatprep.subr.bf16.mxu0 0
        %1469 = vmatpush1.bf16.msra.mxu0 %v1459
        %1470 = vmatprep.subr.bf16.mxu0 0
        %1471 = vmatpush1.bf16.msra.mxu0 %v1458
        %1472 = vmatprep.subr.bf16.mxu0 0
        %1473 = vmatpush1.bf16.msra.mxu0 %v1457
        %1474 = vmatprep.subr.bf16.mxu0 0
        %1475 = vmatpush1.bf16.msra.mxu0 %v1456
        %1476 = vmatprep.subr.bf16.mxu0 0
        %1477 = vmatpush1.bf16.msra.mxu0 %v1455
        %1478 = vmatprep.subr.bf16.mxu0 0
        %1479 = vmatpush1.bf16.msra.mxu0 %v1454
        %1480 = vmatprep.subr.bf16.mxu0 0
        %1481 = vmatpush1.bf16.msra.mxu0 %v1453
        %1482 = vmatprep.subr.bf16.mxu0 0
        %1483 = vmatpush1.bf16.msra.mxu0 %v1452
        %1484 = vmatprep.subr.bf16.mxu0 0
        %1485 = vmatpush2.bf16.msra.mxu0 0
        %1486 = vmatprep.subr.bf16.mxu0 0
        %1487 = vmatpush2.bf16.msra.mxu0 0
        %1488 = vmatprep.subr.bf16.mxu0 0
        %1489 = vmatpush2.bf16.msra.mxu0 0
        %1490 = vmatprep.subr.bf16.mxu0 0
        %1491 = vmatpush2.bf16.msra.mxu0 0
        %1492 = vmatprep.subr.bf16.mxu0 0
        %1493 = vmatpush2.bf16.msra.mxu0 0
        %1494 = vmatprep.subr.bf16.mxu0 0
        %1495 = vmatpush2.bf16.msra.mxu0 0
        %1496 = vmatprep.subr.bf16.mxu0 0
        %1497 = vmatpush2.bf16.msra.mxu0 0
        %1498 = vmatprep.subr.bf16.mxu0 0
        %1499 = vmatpush2.bf16.msra.mxu0 0
        %1500 = vmatprep.mubr.bf16.mxu0 0
        %1501 = vmatmul.mubr.bf16.gmra.mxu0 %v1388
        %v1502 = vpop.f32.mrf.mxu0
        %v1503 = vadd.f32 0.0, %v1502
        %v1504 = vpop.f32.mrf.mxu0
        %v1505 = vpop.f32.mrf.mxu0
        %v1506 = vadd.f32 0.0, %v1505
        %v1507 = vpop.f32.mrf.mxu0
        %1508 = vmatprep.mubr.bf16.mxu0 0
        %1509 = vmatmul.mubr.bf16.gmra.mxu0 %v1389
        %v1510 = vpop.f32.mrf.mxu0
        %v1511 = vadd.f32 0.0, %v1510
        %v1512 = vpop.f32.mrf.mxu0
        %v1513 = vpop.f32.mrf.mxu0
        %v1514 = vadd.f32 0.0, %v1513
        %v1515 = vpop.f32.mrf.mxu0
        %1516 = vmatprep.mubr.bf16.mxu0 0
        %1517 = vmatmul.mubr.bf16.gmra.mxu0 %v1390
        %v1518 = vpop.f32.mrf.mxu0
        %v1519 = vadd.f32 0.0, %v1518
        %v1520 = vpop.f32.mrf.mxu0
        %v1521 = vpop.f32.mrf.mxu0
        %v1522 = vadd.f32 0.0, %v1521
        %v1523 = vpop.f32.mrf.mxu0
        %1524 = vmatprep.mubr.bf16.mxu0 0
        %1525 = vmatmul.mubr.bf16.gmra.mxu0 %v1391
        %v1526 = vpop.f32.mrf.mxu0
        %v1527 = vadd.f32 0.0, %v1526
        %v1528 = vpop.f32.mrf.mxu0
        %v1529 = vpop.f32.mrf.mxu0
        %v1530 = vadd.f32 0.0, %v1529
        %v1531 = vpop.f32.mrf.mxu0
        %1532 = vmatprep.mubr.bf16.mxu0 0
        %1533 = vmatmul.mubr.bf16.gmra.mxu0 %v1392
        %v1534 = vpop.f32.mrf.mxu0
        %v1535 = vadd.f32 0.0, %v1534
        %v1536 = vpop.f32.mrf.mxu0
        %v1537 = vpop.f32.mrf.mxu0
        %v1538 = vadd.f32 0.0, %v1537
        %v1539 = vpop.f32.mrf.mxu0
        %1540 = vmatprep.mubr.bf16.mxu0 0
        %1541 = vmatmul.mubr.bf16.gmra.mxu0 %v1393
        %v1542 = vpop.f32.mrf.mxu0
        %v1543 = vadd.f32 0.0, %v1542
        %v1544 = vpop.f32.mrf.mxu0
        %v1545 = vpop.f32.mrf.mxu0
        %v1546 = vadd.f32 0.0, %v1545
        %v1547 = vpop.f32.mrf.mxu0
        %1548 = vmatprep.mubr.bf16.mxu0 0
        %1549 = vmatmul.mubr.bf16.gmra.mxu0 %v1394
        %v1550 = vpop.f32.mrf.mxu0
        %v1551 = vadd.f32 0.0, %v1550
        %v1552 = vpop.f32.mrf.mxu0
        %v1553 = vpop.f32.mrf.mxu0
        %v1554 = vadd.f32 0.0, %v1553
        %v1555 = vpop.f32.mrf.mxu0
        %1556 = vmatprep.mubr.bf16.mxu0 0
        %1557 = vmatmul.mubr.bf16.gmra.mxu0 %v1395
        %v1558 = vpop.f32.mrf.mxu0
        %v1559 = vadd.f32 0.0, %v1558
        %v1560 = vpop.f32.mrf.mxu0
        %v1561 = vpop.f32.mrf.mxu0
        %v1562 = vadd.f32 0.0, %v1561
        %v1563 = vpop.f32.mrf.mxu0
        %1564 = vmatprep.mubr.bf16.mxu0 0
        %1565 = vmatmul.mubr.bf16.gmra.mxu0 %v1396
        %v1566 = vpop.f32.mrf.mxu0
        %v1567 = vadd.f32 0.0, %v1566
        %v1568 = vpop.f32.mrf.mxu0
        %v1569 = vpop.f32.mrf.mxu0
        %v1570 = vadd.f32 0.0, %v1569
        %v1571 = vpop.f32.mrf.mxu0
        %1572 = vmatprep.mubr.bf16.mxu0 0
        %1573 = vmatmul.mubr.bf16.gmra.mxu0 %v1397
        %v1574 = vpop.f32.mrf.mxu0
        %v1575 = vadd.f32 0.0, %v1574
        %v1576 = vpop.f32.mrf.mxu0
        %v1577 = vpop.f32.mrf.mxu0
        %v1578 = vadd.f32 0.0, %v1577
        %v1579 = vpop.f32.mrf.mxu0
        %1580 = vmatprep.mubr.bf16.mxu0 0
        %1581 = vmatmul.mubr.bf16.gmra.mxu0 %v1398
        %v1582 = vpop.f32.mrf.mxu0
        %v1583 = vadd.f32 0.0, %v1582
        %v1584 = vpop.f32.mrf.mxu0
        %v1585 = vpop.f32.mrf.mxu0
        %v1586 = vadd.f32 0.0, %v1585
        %v1587 = vpop.f32.mrf.mxu0
        %1588 = vmatprep.mubr.bf16.mxu0 0
        %1589 = vmatmul.mubr.bf16.gmra.mxu0 %v1399
        %v1590 = vpop.f32.mrf.mxu0
        %v1591 = vadd.f32 0.0, %v1590
        %v1592 = vpop.f32.mrf.mxu0
        %v1593 = vpop.f32.mrf.mxu0
        %v1594 = vadd.f32 0.0, %v1593
        %v1595 = vpop.f32.mrf.mxu0
        %1596 = vmatprep.mubr.bf16.mxu0 0
        %1597 = vmatmul.mubr.bf16.gmra.mxu0 %v1400
        %v1598 = vpop.f32.mrf.mxu0
        %v1599 = vadd.f32 0.0, %v1598
        %v1600 = vpop.f32.mrf.mxu0
        %v1601 = vpop.f32.mrf.mxu0
        %v1602 = vadd.f32 0.0, %v1601
        %v1603 = vpop.f32.mrf.mxu0
        %1604 = vmatprep.mubr.bf16.mxu0 0
        %1605 = vmatmul.mubr.bf16.gmra.mxu0 %v1401
        %v1606 = vpop.f32.mrf.mxu0
        %v1607 = vadd.f32 0.0, %v1606
        %v1608 = vpop.f32.mrf.mxu0
        %v1609 = vpop.f32.mrf.mxu0
        %v1610 = vadd.f32 0.0, %v1609
        %v1611 = vpop.f32.mrf.mxu0
        %1612 = vmatprep.mubr.bf16.mxu0 0
        %1613 = vmatmul.mubr.bf16.gmra.mxu0 %v1402
        %v1614 = vpop.f32.mrf.mxu0
        %v1615 = vadd.f32 0.0, %v1614
        %v1616 = vpop.f32.mrf.mxu0
        %v1617 = vpop.f32.mrf.mxu0
        %v1618 = vadd.f32 0.0, %v1617
        %v1619 = vpop.f32.mrf.mxu0
        %1620 = vmatprep.mubr.bf16.mxu0 0
        %1621 = vmatmul.mubr.bf16.gmra.mxu0 %v1403
        %v1622 = vpop.f32.mrf.mxu0
        %v1623 = vadd.f32 0.0, %v1622
        %v1624 = vpop.f32.mrf.mxu0
        %v1625 = vpop.f32.mrf.mxu0
        %v1626 = vadd.f32 0.0, %v1625
        %v1627 = vpop.f32.mrf.mxu0
        %1628 = vdwg.mxu0
        %v1629 = vmax.f32 %v1503, %v1567
        %v1630 = vmax.f32 %v1506, %v1570
        %v1631 = vmax.f32 %v1511, %v1575
        %v1632 = vmax.f32 %v1514, %v1578
        %v1633 = vmax.f32 %v1519, %v1583
        %v1634 = vmax.f32 %v1522, %v1586
        %v1635 = vmax.f32 %v1527, %v1591
        %v1636 = vmax.f32 %v1530, %v1594
        %v1637 = vmax.f32 %v1535, %v1599
        %v1638 = vmax.f32 %v1538, %v1602
        %v1639 = vmax.f32 %v1543, %v1607
        %v1640 = vmax.f32 %v1546, %v1610
        %v1641 = vmax.f32 %v1551, %v1615
        %v1642 = vmax.f32 %v1554, %v1618
        %v1643 = vmax.f32 %v1559, %v1623
        %v1644 = vmax.f32 %v1562, %v1626
        %v1645 = vmax.f32 %v1629, %v1630
        %v1646 = vmax.f32 %v1631, %v1632
        %v1647 = vmax.f32 %v1633, %v1634
        %v1648 = vmax.f32 %v1635, %v1636
        %v1649 = vmax.f32 %v1637, %v1638
        %v1650 = vmax.f32 %v1639, %v1640
        %v1651 = vmax.f32 %v1641, %v1642
        %v1652 = vmax.f32 %v1643, %v1644
        %v1653 = vld [vmem:[%s3] sm:$0x1]
        %v1655 = vlaneseq
        %v1656 = vshrl.u32 %v1655, 7
        %v1657 = vsub.s32 0, %v1656
        %v1658 = vrot.slane %v1653, %v1657
        %v1660 = vadd.f32 %v1645, %v1658
        %v1661 = vadd.f32 %v1646, %v1658
        %v1662 = vadd.f32 %v1647, %v1658
        %v1663 = vadd.f32 %v1648, %v1658
        %v1664 = vadd.f32 %v1649, %v1658
        %v1665 = vadd.f32 %v1650, %v1658
        %v1666 = vadd.f32 %v1651, %v1658
        %v1667 = vadd.f32 %v1652, %v1658
        %v1668 = vmul.f32 %v1660, 0.2
        %v1669 = vmul.f32 %v1661, 0.2
        %v1670 = vmul.f32 %v1662, 0.2
        %v1671 = vmul.f32 %v1663, 0.2
        %v1672 = vmul.f32 %v1664, 0.2
        %v1673 = vmul.f32 %v1665, 0.2
        %v1674 = vmul.f32 %v1666, 0.2
        %v1675 = vmul.f32 %v1667, 0.2
        %v1676 = vmax.f32 %v1660, %v1668
        %v1677 = vmax.f32 %v1661, %v1669
        %v1678 = vmax.f32 %v1662, %v1670
        %v1679 = vmax.f32 %v1663, %v1671
        %v1680 = vmax.f32 %v1664, %v1672
        %v1681 = vmax.f32 %v1665, %v1673
        %v1682 = vmax.f32 %v1666, %v1674
        %v1683 = vmax.f32 %v1667, %v1675
        %1684 = vst [vmem:[%s239] sm:$0xff] %v1676
        %1685 = vst [vmem:[%s239 + $0x8] sm:$0xff] %v1677
        %1686 = vst [vmem:[%s239 + $0x10] sm:$0xff] %v1678
        %1687 = vst [vmem:[%s239 + $0x18] sm:$0xff] %v1679
        %1688 = vst [vmem:[%s239 + $0x20] sm:$0xff] %v1680
        %1689 = vst [vmem:[%s239 + $0x28] sm:$0xff] %v1681
        %1690 = vst [vmem:[%s239 + $0x30] sm:$0xff] %v1682
        %1691 = vst [vmem:[%s239 + $0x38] sm:$0xff] %v1683
        %s1692 = sand.u32 %s138, 1
        %s1693 = scalar_lea.sflag [#allocation4], %s1692
        %s1694 = sand.u32 %s138, 1
        %s1695 = smul.addr %s1694, 64
        %s1696 = scalar_lea.vmem [#allocation3], %s1695
        // Predicated region
        $region37: #{conv_block_forward.1} parent=35 // pred_check
          %p1697 = pneg %p148
        $region38: #{conv_block_forward.1} parent=35 // pred_check_branch
          %1699 = sbr.rel (%p1697) target = $region40
        $region39: #{conv_block_forward.1} parent=35 // pred_region
          %s1701 = ssub.s32 1024, 1024
          %1702 = vsyncadd %s1693, %s1701
          %s1703 = smul.addr %s23, 8
          %s1704 = smul.addr %s22, 8
          %s1705 = sadd.s32 %s1703, %s1704
          %s1706 = smul.addr %s1705, 128
          %s1707 = scalar_lea.hbm %s4, %s1706
          %s1708 = sshll.u32 %s1696, 4
          %s1709 = int_to_ptr.vmem [resolvable:$true] %s1708
          %1714 = dma.vmem_to_hbm [thread:$0]  %s1709, 1024, %s1707, %s1693, 128, 128, 8
        $region40: #{conv_block_forward.1} parent=35 // pred_fallthru
          _
      $region36: #{conv_block_forward.1} parent=5 // pred_fallthru
        _
      %p1715 = scmp.le.s32.totalorder 2, %s13
      // Predicated region
      $region41: #{conv_block_forward.1} parent=5 // pred_check
        %p1716 = pneg %p1715
      $region42: #{conv_block_forward.1} parent=5 // pred_check_branch
        %1718 = sbr.rel (%p1716) target = $region44
      $region43: #{conv_block_forward.1} parent=5 // pred_region
        %s1719 = ssub.s32 %s13, 2
        // Predicated region
        $region45: #{conv_block_forward.1} parent=43 // pred_check
          %p1720 = pneg %p154
        $region46: #{conv_block_forward.1} parent=43 // pred_check_branch
          %1722 = sbr.rel (%p1720) target = $region48
        $region47: #{conv_block_forward.1} parent=43 // pred_region
          %s1723 = sand.u32 %s139, 1
          %s1724 = scalar_lea.sflag [#allocation4], %s1723
          %s1725 = sand.u32 %s139, 1
          %s1726 = smul.addr %s1725, 64
          %s1727 = scalar_lea.vmem [#allocation3], %s1726
          %1728 = dma.done %s1724, 1024
        $region48: #{conv_block_forward.1} parent=43 // pred_fallthru
          _
      $region44: #{conv_block_forward.1} parent=5 // pred_fallthru
        _
    $region6: #{conv_block_forward.1} parent=1 // loop_footer
      %s17 = sadd.s32 1, %s13
    $region7: #{conv_block_forward.1} parent=1 // loop_footer_branch
      %12 = sbr.rel target = $region3
    $region8: #{conv_block_forward.1} parent=1 // loop_exit
      _
    %1729 = vsyncpa [#allocation4], 1
    %s1730 = scalar_lea.sflag [#allocation4], 1
    %1731 = vsyncpa %s1730, 1

</llo_original>
